<compile_context>
chip_gen: v7x
topology: tpu7x:2x2x1
jax: 0.10.0
libtpu: 0.0.40
codegen_flags: <defaults>
</compile_context>

<pallas_src>
import functools

import jax
import jax.numpy as jnp
from jax import lax
from jax.experimental import pallas as pl
from jax.experimental.pallas import tpu as pltpu


# ----------------------------------------------------------------------------
# Kernel
# ----------------------------------------------------------------------------
def encoder_attention_kernel(src_f_ref, src_b_ref,              # chunk inputs
                             wih_f, whh_f, bih_f, bhh_f,        # forward GRU
                             wih_b, whh_b, bih_b, bhh_b,        # backward GRU
                             w_fc_f, w_fc_b, b_fc,              # fc split by rows
                             out_ref, hidden_ref,               # outputs
                             gi_f_ref, gi_b_ref,                # per-chunk gi
                             hf_ref, hb_ref, hb_first_ref,      # carries
                             *, chunk, batch_p, hid):
    T, Bp, H = chunk, batch_p, hid
    G = 3 * H
    c = pl.program_id(0)
    nc = pl.num_programs(0)

    @pl.when(c == 0)
    def _():
        hf_ref[...] = jnp.zeros_like(hf_ref)
        hb_ref[...] = jnp.zeros_like(hb_ref)

    # ---- chunk input projections (MXU), bih folded in ----------------------
    # fwd direction consumes src chunk c, bwd direction consumes chunk NC-1-c
    # (selected by the BlockSpec index_maps); operands may be bf16, accum f32.
    gi_f_ref[...] = (jnp.dot(src_f_ref[...], wih_f[...],
                             preferred_element_type=jnp.float32) + bih_f[...])
    gi_b_ref[...] = (jnp.dot(src_b_ref[...], wih_b[...],
                             preferred_element_type=jnp.float32) + bih_b[...])

    # Hoist loop-invariant loads / broadcasts (JAX does not CSE broadcasts
    # inside loops).
    whh_f_v = whh_f[...]
    whh_b_v = whh_b[...]
    bhh_f_v = jnp.broadcast_to(bhh_f[...], (Bp, G))
    bhh_b_v = jnp.broadcast_to(bhh_b[...], (Bp, G))

    def gru_h(gi, h, whh, bhh):
        # PyTorch gate order [r, z, n]; bhh_n stays inside r * (.)
        gh = jnp.dot(h, whh, preferred_element_type=jnp.float32) + bhh
        rz = jax.nn.sigmoid(gi[:, :2 * H] + gh[:, :2 * H])   # one EUP push for r,z
        r = rz[:, :H]
        z = rz[:, H:]
        n = jnp.tanh(gi[:, 2 * H:] + r * gh[:, 2 * H:])
        return n + z * (h - n)                               # 1 fewer VPU mul

    def load_gi(ref, t):
        start = t * Bp
        if not isinstance(start, int):                        # traced loop index
            start = pl.multiple_of(start, Bp)                 # Bp % 8 == 0 -> aligned
        return ref[pl.ds(start, Bp), :]

    hf = hf_ref[...]
    hb = hb_ref[...]

    # Peel the first in-chunk step of each direction; at c == 0 the backward
    # peel IS the backward half of outputs[-1] (global timestep L-1).
    hf = gru_h(load_gi(gi_f_ref, 0), hf, whh_f_v, bhh_f_v)
    hb = gru_h(load_gi(gi_b_ref, T - 1), hb, whh_b_v, bhh_b_v)

    @pl.when(c == 0)
    def _():
        hb_first_ref[...] = hb

    # Fused fwd/bwd recurrence: two independent dependency chains hide MXU
    # result latency. Partial unroll keeps LLO visibility without code bloat.
    def body(i, carry):
        h_fwd, h_bwd = carry
        h_fwd = gru_h(load_gi(gi_f_ref, i), h_fwd, whh_f_v, bhh_f_v)
        h_bwd = gru_h(load_gi(gi_b_ref, T - 1 - i), h_bwd, whh_b_v, bhh_b_v)
        return (h_fwd, h_bwd)

    if T > 1:
        hf, hb = lax.fori_loop(1, T, body, (hf, hb),
                               unroll=min(8, T - 1))

    hf_ref[...] = hf
    hb_ref[...] = hb

    @pl.when(c == nc - 1)
    def _():
        # outputs[-1] = cat(fwd_out[-1], bwd_out[-1]); single lane-dense store.
        out_ref[...] = jnp.concatenate([hf, hb_first_ref[...]], axis=1)
        # hidden = tanh(fc(cat(hidden[-2], hidden[-1]))); fc weight split by
        # rows so no lane-axis concat on the matmul path.
        hidden_ref[...] = jnp.tanh(
            jnp.dot(hf, w_fc_f[...], preferred_element_type=jnp.float32)
            + jnp.dot(hb, w_fc_b[...], preferred_element_type=jnp.float32)
            + b_fc[...])


# ----------------------------------------------------------------------------
# Wrapper helpers
# ----------------------------------------------------------------------------
def _default_proj_dtype():
    """bf16 MXU operands on v6e/v7x, f32 on v5e and older (no bf16 VPU/EUP)."""
    try:
        kind = jax.devices()[0].device_kind.lower()
    except Exception:
        return jnp.float32
    if "tpu" not in kind:
        return jnp.float32
    for old in ("v2", "v3", "v4", "v5"):
        if old in kind:
            return jnp.float32
    return jnp.bfloat16


def _pick_chunk(seq_len, chunk_max):
    """Largest divisor of seq_len that is <= chunk_max (no time padding)."""
    t = min(seq_len, max(1, chunk_max))
    while seq_len % t:
        t -= 1
    return t


def _vmem_limit_bytes(T, Bp, E, H, Hd, proj_itemsize):
    G = 3 * H
    f32 = 4
    src_chunk = T * Bp * E * proj_itemsize
    gi = T * Bp * G * f32
    weights = 2 * (E * G * proj_itemsize + H * G * f32 + 2 * G * f32)
    fc = 2 * H * Hd * f32 + Hd * f32
    outs = Bp * (2 * H + Hd) * f32
    carries = 3 * Bp * H * f32
    total = (2 * 2 * src_chunk          # 2 directions x double-buffered blocks
             + 2 * (weights + fc)       # resident weights (+pipeline buffer)
             + 2 * gi + 2 * outs + carries)
    return int(min(total + (16 << 20), 64 << 20))   # headroom; cap at v7x VMEM


def init_params(key, emb_dim, enc_hid, dec_hid):
    ks = jax.random.split(key, 11)
    s = 0.1

    def rnd(k, shape):
        return (s * jax.random.normal(k, shape)).astype(jnp.float32)

    # GRU weights stored transposed (in_dim, 3H) so kernels compute x @ W + b.
    return {
        "enc_wih_f": rnd(ks[0], (emb_dim, 3 * enc_hid)),
        "enc_whh_f": rnd(ks[1], (enc_hid, 3 * enc_hid)),
        "enc_bih_f": rnd(ks[2], (1, 3 * enc_hid)),
        "enc_bhh_f": rnd(ks[3], (1, 3 * enc_hid)),
        "enc_wih_b": rnd(ks[4], (emb_dim, 3 * enc_hid)),
        "enc_whh_b": rnd(ks[5], (enc_hid, 3 * enc_hid)),
        "enc_bih_b": rnd(ks[6], (1, 3 * enc_hid)),
        "enc_bhh_b": rnd(ks[7], (1, 3 * enc_hid)),
        # fc: Linear(2*enc_hid -> dec_hid); W.T split into fwd/bwd row blocks.
        "w_fc_f": rnd(ks[8], (enc_hid, dec_hid)),
        "w_fc_b": rnd(ks[9], (enc_hid, dec_hid)),
        "b_fc": rnd(ks[10], (1, dec_hid)),
    }


# ----------------------------------------------------------------------------
# Forward
# ----------------------------------------------------------------------------
@functools.partial(jax.jit, static_argnames=("chunk_max", "proj_dtype"))
def encoder_attention_forward(src, params, chunk_max=8, proj_dtype=None):
    L, B, E = src.shape
    H = params["enc_whh_f"].shape[0]
    Hd = params["w_fc_f"].shape[1]
    G = 3 * H

    if proj_dtype is None:
        proj_dtype = _default_proj_dtype()

    # Pad batch to a multiple of 8 so every per-step gi load / store is a full
    # aligned (8, lanes) tile. Padded rows are independent and sliced off.
    Bp = ((B + 7) // 8) * 8
    src_p = src if Bp == B else jnp.pad(src, ((0, 0), (0, Bp - B), (0, 0)))

    # Time chunking (streaming): VMEM holds one chunk per direction, not L.
    T = _pick_chunk(L, chunk_max)
    NC = L // T

    src2d = src_p.reshape(L * Bp, E).astype(proj_dtype)
    wih_f = params["enc_wih_f"].astype(proj_dtype)
    wih_b = params["enc_wih_b"].astype(proj_dtype)

    kernel = functools.partial(encoder_attention_kernel,
                               chunk=T, batch_p=Bp, hid=H)

    vmem_limit = _vmem_limit_bytes(T, Bp, E, H, Hd,
                                   jnp.dtype(proj_dtype).itemsize)

    full = lambda shape: pl.BlockSpec(shape, lambda c: (0,) * len(shape))

    out_p, hid_p = pl.pallas_call(
        kernel,
        grid=(NC,),
        out_shape=(jax.ShapeDtypeStruct((Bp, 2 * H), jnp.float32),
                   jax.ShapeDtypeStruct((Bp, Hd), jnp.float32)),
        in_specs=[
            # forward direction reads chunk c, backward reads chunk NC-1-c
            pl.BlockSpec((T * Bp, E), lambda c: (c, 0)),
            pl.BlockSpec((T * Bp, E), lambda c: (NC - 1 - c, 0)),
            full((E, G)), full((H, G)), full((1, G)), full((1, G)),   # fwd GRU
            full((E, G)), full((H, G)), full((1, G)), full((1, G)),   # bwd GRU
            full((H, Hd)), full((H, Hd)), full((1, Hd)),              # fc
        ],
        out_specs=(pl.BlockSpec((Bp, 2 * H), lambda c: (0, 0)),
                   pl.BlockSpec((Bp, Hd), lambda c: (0, 0))),
        scratch_shapes=[
            pltpu.VMEM((T * Bp, G), jnp.float32),   # gi fwd chunk
            pltpu.VMEM((T * Bp, G), jnp.float32),   # gi bwd chunk
            pltpu.VMEM((Bp, H), jnp.float32),       # h_fwd carry
            pltpu.VMEM((Bp, H), jnp.float32),       # h_bwd carry
            pltpu.VMEM((Bp, H), jnp.float32),       # h_bwd after first step
        ],
        compiler_params=pltpu.CompilerParams(
            dimension_semantics=("arbitrary",),
            vmem_limit_bytes=vmem_limit),
    )(src2d, src2d,
      wih_f, params["enc_whh_f"], params["enc_bih_f"], params["enc_bhh_f"],
      wih_b, params["enc_whh_b"], params["enc_bih_b"], params["enc_bhh_b"],
      params["w_fc_f"], params["w_fc_b"], params["b_fc"])

    # strip batch padding; outputs = outputs[-1, :, :].unsqueeze(0)
    return out_p[:B][None], hid_p[:B]


# ----------------------------------------------------------------------------
# Pure-JAX reference (correctness smoke test only)
# ----------------------------------------------------------------------------
def encoder_attention_ref(src, p):
    L, B, _ = src.shape
    H = p["enc_whh_f"].shape[0]

    def cell(x, h, wih, whh, bih, bhh):
        gi = x @ wih + bih
        gh = h @ whh + bhh
        r = jax.nn.sigmoid(gi[:, :H] + gh[:, :H])
        z = jax.nn.sigmoid(gi[:, H:2 * H] + gh[:, H:2 * H])
        n = jnp.tanh(gi[:, 2 * H:] + r * gh[:, 2 * H:])
        return (1.0 - z) * n + z * h

    h_f = jnp.zeros((B, H), jnp.float32)
    for t in range(L):
        h_f = cell(src[t], h_f, p["enc_wih_f"], p["enc_whh_f"],
                   p["enc_bih_f"], p["enc_bhh_f"])

    h_b = jnp.zeros((B, H), jnp.float32)
    h_b_first = None
    for i in range(L):
        t = L - 1 - i
        h_b = cell(src[t], h_b, p["enc_wih_b"], p["enc_whh_b"],
                   p["enc_bih_b"], p["enc_bhh_b"])
        if i == 0:
            h_b_first = h_b

    outputs = jnp.concatenate([h_f, h_b_first], axis=1)[None]
    hidden = jnp.tanh(h_f @ p["w_fc_f"] + h_b @ p["w_fc_b"] + p["b_fc"])
    return outputs, hidden


if __name__ == "__main__":
    SRC_LEN, BATCH, EMB_DIM = 8, 2, 16
    ENC_HID, DEC_HID = 32, 32

    key = jax.random.PRNGKey(0)
    k_src, k_par = jax.random.split(key)
    src = jax.random.normal(k_src, (SRC_LEN, BATCH, EMB_DIM), dtype=jnp.float32)
    params = init_params(k_par, EMB_DIM, ENC_HID, DEC_HID)

    # chunk_max=4 -> 2 time chunks, so the streaming grid path is exercised.
    outputs, hidden = encoder_attention_forward(src, params, chunk_max=4)
    outputs, hidden = jax.block_until_ready((outputs, hidden))

    assert outputs.shape == (1, BATCH, 2 * ENC_HID)
    assert hidden.shape == (BATCH, DEC_HID)
    assert bool(jnp.all(jnp.isfinite(outputs)))
    assert bool(jnp.all(jnp.isfinite(hidden)))

    with jax.default_matmul_precision("highest"):
        ref_out, ref_hid = encoder_attention_ref(src, params)

    tol = 1e-2 if _default_proj_dtype() == jnp.float32 else 5e-2
    assert float(jnp.max(jnp.abs(outputs - ref_out))) < tol
    assert float(jnp.max(jnp.abs(hidden - ref_hid))) < tol

    print("KERNEL_OK")
</pallas_src>

<mosaic_0001>
module attributes {stable_mosaic.version = 11 : i64} {
  func.func @encoder_attention_kernel(%arg0: i32, %arg1: memref<32x16xf32, #tpu.memory_space<vmem>>, %arg2: memref<32x16xf32, #tpu.memory_space<vmem>>, %arg3: memref<16x96xf32, #tpu.memory_space<vmem>>, %arg4: memref<32x96xf32, #tpu.memory_space<vmem>>, %arg5: memref<1x96xf32, #tpu.memory_space<vmem>>, %arg6: memref<1x96xf32, #tpu.memory_space<vmem>>, %arg7: memref<16x96xf32, #tpu.memory_space<vmem>>, %arg8: memref<32x96xf32, #tpu.memory_space<vmem>>, %arg9: memref<1x96xf32, #tpu.memory_space<vmem>>, %arg10: memref<1x96xf32, #tpu.memory_space<vmem>>, %arg11: memref<32x32xf32, #tpu.memory_space<vmem>>, %arg12: memref<32x32xf32, #tpu.memory_space<vmem>>, %arg13: memref<1x32xf32, #tpu.memory_space<vmem>>, %arg14: memref<8x64xf32, #tpu.memory_space<vmem>>, %arg15: memref<8x32xf32, #tpu.memory_space<vmem>>, %arg16: memref<32x96xf32, #tpu.memory_space<vmem>>, %arg17: memref<32x96xf32, #tpu.memory_space<vmem>>, %arg18: memref<8x32xf32, #tpu.memory_space<vmem>>, %arg19: memref<8x32xf32, #tpu.memory_space<vmem>>, %arg20: memref<8x32xf32, #tpu.memory_space<vmem>>) attributes {dimension_semantics = [#tpu.dimension_semantics<arbitrary>], iteration_bounds = array<i64: 2>, scalar_prefetch = 0 : i64, scratch_operands = 5 : i64, tpu.core_type = #tpu.core_type<tc>, window_params = [{transform_indices = @transform_0, window_bounds = array<i64: 32, 16>}, {transform_indices = @transform_1, window_bounds = array<i64: 32, 16>}, {pipeline_mode = #tpu.pipeline_mode<synchronous>, transform_indices = @transform_2, window_bounds = array<i64: 16, 96>}, {pipeline_mode = #tpu.pipeline_mode<synchronous>, transform_indices = @transform_3, window_bounds = array<i64: 32, 96>}, {pipeline_mode = #tpu.pipeline_mode<synchronous>, transform_indices = @transform_4, window_bounds = array<i64: 1, 96>}, {pipeline_mode = #tpu.pipeline_mode<synchronous>, transform_indices = @transform_5, window_bounds = array<i64: 1, 96>}, {pipeline_mode = #tpu.pipeline_mode<synchronous>, transform_indices = @transform_6, window_bounds = array<i64: 16, 96>}, {pipeline_mode = #tpu.pipeline_mode<synchronous>, transform_indices = @transform_7, window_bounds = array<i64: 32, 96>}, {pipeline_mode = #tpu.pipeline_mode<synchronous>, transform_indices = @transform_8, window_bounds = array<i64: 1, 96>}, {pipeline_mode = #tpu.pipeline_mode<synchronous>, transform_indices = @transform_9, window_bounds = array<i64: 1, 96>}, {pipeline_mode = #tpu.pipeline_mode<synchronous>, transform_indices = @transform_10, window_bounds = array<i64: 32, 32>}, {pipeline_mode = #tpu.pipeline_mode<synchronous>, transform_indices = @transform_11, window_bounds = array<i64: 32, 32>}, {pipeline_mode = #tpu.pipeline_mode<synchronous>, transform_indices = @transform_12, window_bounds = array<i64: 1, 32>}, {pipeline_mode = #tpu.pipeline_mode<synchronous>, transform_indices = @transform_13, window_bounds = array<i64: 8, 64>}, {pipeline_mode = #tpu.pipeline_mode<synchronous>, transform_indices = @transform_14, window_bounds = array<i64: 8, 32>}]} {
    %c0_i32 = arith.constant 0 : i32
    %0 = arith.cmpi eq, %arg0, %c0_i32 : i32
    %1 = arith.extui %0 : i1 to i32
    %c0_i32_0 = arith.constant 0 : i32
    %2 = arith.cmpi ne, %1, %c0_i32_0 : i32
    scf.if %2 {
      %cst_71 = arith.constant 0.000000e+00 : f32
      %224 = vector.broadcast %cst_71 : f32 to vector<8x32xf32>
      %c0_72 = arith.constant 0 : index
      %c0_73 = arith.constant 0 : index
      %225 = vector.load %arg18[%c0_72, %c0_73] : memref<8x32xf32, #tpu.memory_space<vmem>>, vector<8x32xf32>
      tpu.vector_store %arg18[%c0_72, %c0_73], %224 {strides = array<i32>} : memref<8x32xf32, #tpu.memory_space<vmem>>, vector<8x32xf32>,
      %cst_74 = arith.constant 0.000000e+00 : f32
      %226 = vector.broadcast %cst_74 : f32 to vector<8x32xf32>
      %c0_75 = arith.constant 0 : index
      %c0_76 = arith.constant 0 : index
      %227 = vector.load %arg19[%c0_75, %c0_76] : memref<8x32xf32, #tpu.memory_space<vmem>>, vector<8x32xf32>
      tpu.vector_store %arg19[%c0_75, %c0_76], %226 {strides = array<i32>} : memref<8x32xf32, #tpu.memory_space<vmem>>, vector<8x32xf32>,
    } else {
    }
    %c0 = arith.constant 0 : index
    %c0_1 = arith.constant 0 : index
    %3 = vector.load %arg1[%c0, %c0_1] : memref<32x16xf32, #tpu.memory_space<vmem>>, vector<32x16xf32>
    %c0_2 = arith.constant 0 : index
    %c0_3 = arith.constant 0 : index
    %4 = vector.load %arg3[%c0_2, %c0_3] : memref<16x96xf32, #tpu.memory_space<vmem>>, vector<16x96xf32>
    %cst = arith.constant dense<0.000000e+00> : vector<32x96xf32>
    %5 = tpu.matmul %3, %4, %cst {dimension_numbers = #tpu.dot_dimension_numbers<[1], [0], [0], [1], [0, 0, 1, 1], [], []>} : vector<32x16xf32>, vector<16x96xf32>, vector<32x96xf32> -> vector<32x96xf32>
    %c0_4 = arith.constant 0 : index
    %c0_5 = arith.constant 0 : index
    %6 = vector.load %arg5[%c0_4, %c0_5] : memref<1x96xf32, #tpu.memory_space<vmem>>, vector<1x96xf32>
    %7 = vector.broadcast %6 : vector<1x96xf32> to vector<32x96xf32>
    %8 = arith.addf %5, %7 : vector<32x96xf32>
    %c0_6 = arith.constant 0 : index
    %c0_7 = arith.constant 0 : index
    %9 = vector.load %arg16[%c0_6, %c0_7] : memref<32x96xf32, #tpu.memory_space<vmem>>, vector<32x96xf32>
    tpu.vector_store %arg16[%c0_6, %c0_7], %8 {strides = array<i32>} : memref<32x96xf32, #tpu.memory_space<vmem>>, vector<32x96xf32>,
    %c0_8 = arith.constant 0 : index
    %c0_9 = arith.constant 0 : index
    %10 = vector.load %arg2[%c0_8, %c0_9] : memref<32x16xf32, #tpu.memory_space<vmem>>, vector<32x16xf32>
    %c0_10 = arith.constant 0 : index
    %c0_11 = arith.constant 0 : index
    %11 = vector.load %arg7[%c0_10, %c0_11] : memref<16x96xf32, #tpu.memory_space<vmem>>, vector<16x96xf32>
    %cst_12 = arith.constant dense<0.000000e+00> : vector<32x96xf32>
    %12 = tpu.matmul %10, %11, %cst_12 {dimension_numbers = #tpu.dot_dimension_numbers<[1], [0], [0], [1], [0, 0, 1, 1], [], []>} : vector<32x16xf32>, vector<16x96xf32>, vector<32x96xf32> -> vector<32x96xf32>
    %c0_13 = arith.constant 0 : index
    %c0_14 = arith.constant 0 : index
    %13 = vector.load %arg9[%c0_13, %c0_14] : memref<1x96xf32, #tpu.memory_space<vmem>>, vector<1x96xf32>
    %14 = vector.broadcast %13 : vector<1x96xf32> to vector<32x96xf32>
    %15 = arith.addf %12, %14 : vector<32x96xf32>
    %c0_15 = arith.constant 0 : index
    %c0_16 = arith.constant 0 : index
    %16 = vector.load %arg17[%c0_15, %c0_16] : memref<32x96xf32, #tpu.memory_space<vmem>>, vector<32x96xf32>
    tpu.vector_store %arg17[%c0_15, %c0_16], %15 {strides = array<i32>} : memref<32x96xf32, #tpu.memory_space<vmem>>, vector<32x96xf32>,
    %c0_17 = arith.constant 0 : index
    %c0_18 = arith.constant 0 : index
    %17 = vector.load %arg4[%c0_17, %c0_18] : memref<32x96xf32, #tpu.memory_space<vmem>>, vector<32x96xf32>
    %c0_19 = arith.constant 0 : index
    %c0_20 = arith.constant 0 : index
    %18 = vector.load %arg8[%c0_19, %c0_20] : memref<32x96xf32, #tpu.memory_space<vmem>>, vector<32x96xf32>
    %c0_21 = arith.constant 0 : index
    %c0_22 = arith.constant 0 : index
    %19 = vector.load %arg6[%c0_21, %c0_22] : memref<1x96xf32, #tpu.memory_space<vmem>>, vector<1x96xf32>
    %20 = vector.shape_cast %19 : vector<1x96xf32> to vector<1x96xf32>
    %21 = vector.broadcast %20 : vector<1x96xf32> to vector<8x96xf32>
    %c0_23 = arith.constant 0 : index
    %c0_24 = arith.constant 0 : index
    %22 = vector.load %arg10[%c0_23, %c0_24] : memref<1x96xf32, #tpu.memory_space<vmem>>, vector<1x96xf32>
    %23 = vector.shape_cast %22 : vector<1x96xf32> to vector<1x96xf32>
    %24 = vector.broadcast %23 : vector<1x96xf32> to vector<8x96xf32>
    %c0_25 = arith.constant 0 : index
    %c0_26 = arith.constant 0 : index
    %25 = vector.load %arg18[%c0_25, %c0_26] : memref<8x32xf32, #tpu.memory_space<vmem>>, vector<8x32xf32>
    %c0_27 = arith.constant 0 : index
    %c0_28 = arith.constant 0 : index
    %26 = vector.load %arg19[%c0_27, %c0_28] : memref<8x32xf32, #tpu.memory_space<vmem>>, vector<8x32xf32>
    %c0_29 = arith.constant 0 : index
    %c0_30 = arith.constant 0 : index
    %27 = vector.load %arg16[%c0_29, %c0_30] : memref<32x96xf32, #tpu.memory_space<vmem>>, vector<8x96xf32>
    %cst_31 = arith.constant dense<0.000000e+00> : vector<8x96xf32>
    %28 = tpu.matmul %25, %17, %cst_31 {dimension_numbers = #tpu.dot_dimension_numbers<[1], [0], [0], [1], [0, 0, 1, 1], [], []>} : vector<8x32xf32>, vector<32x96xf32>, vector<8x96xf32> -> vector<8x96xf32>
    %29 = arith.addf %28, %21 : vector<8x96xf32>
    %30 = vector.extract_strided_slice %27 {offsets = [0, 0], sizes = [8, 64], strides = [1, 1]} : vector<8x96xf32> to vector<8x64xf32>
    %31 = vector.extract_strided_slice %29 {offsets = [0, 0], sizes = [8, 64], strides = [1, 1]} : vector<8x96xf32> to vector<8x64xf32>
    %32 = arith.addf %30, %31 : vector<8x64xf32>
    %33 = arith.negf %32 : vector<8x64xf32>
    %34 = math.exp %33 : vector<8x64xf32>
    %cst_32 = arith.constant 1.000000e+00 : f32
    %35 = vector.broadcast %cst_32 : f32 to vector<8x64xf32>
    %36 = arith.addf %35, %34 : vector<8x64xf32>
    %37 = arith.divf %35, %36 : vector<8x64xf32>
    %38 = vector.extract_strided_slice %37 {offsets = [0, 0], sizes = [8, 32], strides = [1, 1]} : vector<8x64xf32> to vector<8x32xf32>
    %39 = vector.extract_strided_slice %37 {offsets = [0, 32], sizes = [8, 32], strides = [1, 1]} : vector<8x64xf32> to vector<8x32xf32>
    %40 = vector.extract_strided_slice %27 {offsets = [0, 64], sizes = [8, 32], strides = [1, 1]} : vector<8x96xf32> to vector<8x32xf32>
    %41 = vector.extract_strided_slice %29 {offsets = [0, 64], sizes = [8, 32], strides = [1, 1]} : vector<8x96xf32> to vector<8x32xf32>
    %42 = arith.mulf %38, %41 : vector<8x32xf32>
    %43 = arith.addf %40, %42 : vector<8x32xf32>
    %44 = math.tanh %43 : vector<8x32xf32>
    %45 = arith.subf %25, %44 : vector<8x32xf32>
    %46 = arith.mulf %39, %45 : vector<8x32xf32>
    %47 = arith.addf %44, %46 : vector<8x32xf32>
    %c24 = arith.constant 24 : index
    %c0_33 = arith.constant 0 : index
    %48 = vector.load %arg17[%c24, %c0_33] : memref<32x96xf32, #tpu.memory_space<vmem>>, vector<8x96xf32>
    %cst_34 = arith.constant dense<0.000000e+00> : vector<8x96xf32>
    %49 = tpu.matmul %26, %18, %cst_34 {dimension_numbers = #tpu.dot_dimension_numbers<[1], [0], [0], [1], [0, 0, 1, 1], [], []>} : vector<8x32xf32>, vector<32x96xf32>, vector<8x96xf32> -> vector<8x96xf32>
    %50 = arith.addf %49, %24 : vector<8x96xf32>
    %51 = vector.extract_strided_slice %48 {offsets = [0, 0], sizes = [8, 64], strides = [1, 1]} : vector<8x96xf32> to vector<8x64xf32>
    %52 = vector.extract_strided_slice %50 {offsets = [0, 0], sizes = [8, 64], strides = [1, 1]} : vector<8x96xf32> to vector<8x64xf32>
    %53 = arith.addf %51, %52 : vector<8x64xf32>
    %54 = arith.negf %53 : vector<8x64xf32>
    %55 = math.exp %54 : vector<8x64xf32>
    %cst_35 = arith.constant 1.000000e+00 : f32
    %56 = vector.broadcast %cst_35 : f32 to vector<8x64xf32>
    %57 = arith.addf %56, %55 : vector<8x64xf32>
    %58 = arith.divf %56, %57 : vector<8x64xf32>
    %59 = vector.extract_strided_slice %58 {offsets = [0, 0], sizes = [8, 32], strides = [1, 1]} : vector<8x64xf32> to vector<8x32xf32>
    %60 = vector.extract_strided_slice %58 {offsets = [0, 32], sizes = [8, 32], strides = [1, 1]} : vector<8x64xf32> to vector<8x32xf32>
    %61 = vector.extract_strided_slice %48 {offsets = [0, 64], sizes = [8, 32], strides = [1, 1]} : vector<8x96xf32> to vector<8x32xf32>
    %62 = vector.extract_strided_slice %50 {offsets = [0, 64], sizes = [8, 32], strides = [1, 1]} : vector<8x96xf32> to vector<8x32xf32>
    %63 = arith.mulf %59, %62 : vector<8x32xf32>
    %64 = arith.addf %61, %63 : vector<8x32xf32>
    %65 = math.tanh %64 : vector<8x32xf32>
    %66 = arith.subf %26, %65 : vector<8x32xf32>
    %67 = arith.mulf %60, %66 : vector<8x32xf32>
    %68 = arith.addf %65, %67 : vector<8x32xf32>
    %c0_i32_36 = arith.constant 0 : i32
    %69 = arith.cmpi eq, %arg0, %c0_i32_36 : i32
    %70 = arith.extui %69 : i1 to i32
    %c0_i32_37 = arith.constant 0 : i32
    %71 = arith.cmpi ne, %70, %c0_i32_37 : i32
    scf.if %71 {
      %c0_71 = arith.constant 0 : index
      %c0_72 = arith.constant 0 : index
      %224 = vector.load %arg20[%c0_71, %c0_72] : memref<8x32xf32, #tpu.memory_space<vmem>>, vector<8x32xf32>
      tpu.vector_store %arg20[%c0_71, %c0_72], %68 {strides = array<i32>} : memref<8x32xf32, #tpu.memory_space<vmem>>, vector<8x32xf32>,
    } else {
    }
    %c1_i32 = arith.constant 1 : i32
    %c8_i32 = arith.constant 8 : i32
    %72 = arith.muli %c1_i32, %c8_i32 : i32
    %73 = tpu.assume_multiple %72, 8 : i32
    %74 = arith.index_cast %73 : i32 to index
    %c0_38 = arith.constant 0 : index
    %75 = vector.load %arg16[%74, %c0_38] : memref<32x96xf32, #tpu.memory_space<vmem>>, vector<8x96xf32>
    %cst_39 = arith.constant dense<0.000000e+00> : vector<8x96xf32>
    %76 = tpu.matmul %47, %17, %cst_39 {dimension_numbers = #tpu.dot_dimension_numbers<[1], [0], [0], [1], [0, 0, 1, 1], [], []>} : vector<8x32xf32>, vector<32x96xf32>, vector<8x96xf32> -> vector<8x96xf32>
    %77 = arith.addf %76, %21 : vector<8x96xf32>
    %78 = vector.extract_strided_slice %75 {offsets = [0, 0], sizes = [8, 64], strides = [1, 1]} : vector<8x96xf32> to vector<8x64xf32>
    %79 = vector.extract_strided_slice %77 {offsets = [0, 0], sizes = [8, 64], strides = [1, 1]} : vector<8x96xf32> to vector<8x64xf32>
    %80 = arith.addf %78, %79 : vector<8x64xf32>
    %81 = arith.negf %80 : vector<8x64xf32>
    %82 = math.exp %81 : vector<8x64xf32>
    %cst_40 = arith.constant 1.000000e+00 : f32
    %83 = vector.broadcast %cst_40 : f32 to vector<8x64xf32>
    %84 = arith.addf %83, %82 : vector<8x64xf32>
    %85 = arith.divf %83, %84 : vector<8x64xf32>
    %86 = vector.extract_strided_slice %85 {offsets = [0, 0], sizes = [8, 32], strides = [1, 1]} : vector<8x64xf32> to vector<8x32xf32>
    %87 = vector.extract_strided_slice %85 {offsets = [0, 32], sizes = [8, 32], strides = [1, 1]} : vector<8x64xf32> to vector<8x32xf32>
    %88 = vector.extract_strided_slice %75 {offsets = [0, 64], sizes = [8, 32], strides = [1, 1]} : vector<8x96xf32> to vector<8x32xf32>
    %89 = vector.extract_strided_slice %77 {offsets = [0, 64], sizes = [8, 32], strides = [1, 1]} : vector<8x96xf32> to vector<8x32xf32>
    %90 = arith.mulf %86, %89 : vector<8x32xf32>
    %91 = arith.addf %88, %90 : vector<8x32xf32>
    %92 = math.tanh %91 : vector<8x32xf32>
    %93 = arith.subf %47, %92 : vector<8x32xf32>
    %94 = arith.mulf %87, %93 : vector<8x32xf32>
    %95 = arith.addf %92, %94 : vector<8x32xf32>
    %c3_i32 = arith.constant 3 : i32
    %96 = arith.subi %c3_i32, %c1_i32 : i32
    %c8_i32_41 = arith.constant 8 : i32
    %97 = arith.muli %96, %c8_i32_41 : i32
    %98 = tpu.assume_multiple %97, 8 : i32
    %99 = arith.index_cast %98 : i32 to index
    %c0_42 = arith.constant 0 : index
    %100 = vector.load %arg17[%99, %c0_42] : memref<32x96xf32, #tpu.memory_space<vmem>>, vector<8x96xf32>
    %cst_43 = arith.constant dense<0.000000e+00> : vector<8x96xf32>
    %101 = tpu.matmul %68, %18, %cst_43 {dimension_numbers = #tpu.dot_dimension_numbers<[1], [0], [0], [1], [0, 0, 1, 1], [], []>} : vector<8x32xf32>, vector<32x96xf32>, vector<8x96xf32> -> vector<8x96xf32>
    %102 = arith.addf %101, %24 : vector<8x96xf32>
    %103 = vector.extract_strided_slice %100 {offsets = [0, 0], sizes = [8, 64], strides = [1, 1]} : vector<8x96xf32> to vector<8x64xf32>
    %104 = vector.extract_strided_slice %102 {offsets = [0, 0], sizes = [8, 64], strides = [1, 1]} : vector<8x96xf32> to vector<8x64xf32>
    %105 = arith.addf %103, %104 : vector<8x64xf32>
    %106 = arith.negf %105 : vector<8x64xf32>
    %107 = math.exp %106 : vector<8x64xf32>
    %cst_44 = arith.constant 1.000000e+00 : f32
    %108 = vector.broadcast %cst_44 : f32 to vector<8x64xf32>
    %109 = arith.addf %108, %107 : vector<8x64xf32>
    %110 = arith.divf %108, %109 : vector<8x64xf32>
    %111 = vector.extract_strided_slice %110 {offsets = [0, 0], sizes = [8, 32], strides = [1, 1]} : vector<8x64xf32> to vector<8x32xf32>
    %112 = vector.extract_strided_slice %110 {offsets = [0, 32], sizes = [8, 32], strides = [1, 1]} : vector<8x64xf32> to vector<8x32xf32>
    %113 = vector.extract_strided_slice %100 {offsets = [0, 64], sizes = [8, 32], strides = [1, 1]} : vector<8x96xf32> to vector<8x32xf32>
    %114 = vector.extract_strided_slice %102 {offsets = [0, 64], sizes = [8, 32], strides = [1, 1]} : vector<8x96xf32> to vector<8x32xf32>
    %115 = arith.mulf %111, %114 : vector<8x32xf32>
    %116 = arith.addf %113, %115 : vector<8x32xf32>
    %117 = math.tanh %116 : vector<8x32xf32>
    %118 = arith.subf %68, %117 : vector<8x32xf32>
    %119 = arith.mulf %112, %118 : vector<8x32xf32>
    %120 = arith.addf %117, %119 : vector<8x32xf32>
    %c2_i32 = arith.constant 2 : i32
    %c8_i32_45 = arith.constant 8 : i32
    %121 = arith.muli %c2_i32, %c8_i32_45 : i32
    %122 = tpu.assume_multiple %121, 8 : i32
    %123 = arith.index_cast %122 : i32 to index
    %c0_46 = arith.constant 0 : index
    %124 = vector.load %arg16[%123, %c0_46] : memref<32x96xf32, #tpu.memory_space<vmem>>, vector<8x96xf32>
    %cst_47 = arith.constant dense<0.000000e+00> : vector<8x96xf32>
    %125 = tpu.matmul %95, %17, %cst_47 {dimension_numbers = #tpu.dot_dimension_numbers<[1], [0], [0], [1], [0, 0, 1, 1], [], []>} : vector<8x32xf32>, vector<32x96xf32>, vector<8x96xf32> -> vector<8x96xf32>
    %126 = arith.addf %125, %21 : vector<8x96xf32>
    %127 = vector.extract_strided_slice %124 {offsets = [0, 0], sizes = [8, 64], strides = [1, 1]} : vector<8x96xf32> to vector<8x64xf32>
    %128 = vector.extract_strided_slice %126 {offsets = [0, 0], sizes = [8, 64], strides = [1, 1]} : vector<8x96xf32> to vector<8x64xf32>
    %129 = arith.addf %127, %128 : vector<8x64xf32>
    %130 = arith.negf %129 : vector<8x64xf32>
    %131 = math.exp %130 : vector<8x64xf32>
    %cst_48 = arith.constant 1.000000e+00 : f32
    %132 = vector.broadcast %cst_48 : f32 to vector<8x64xf32>
    %133 = arith.addf %132, %131 : vector<8x64xf32>
    %134 = arith.divf %132, %133 : vector<8x64xf32>
    %135 = vector.extract_strided_slice %134 {offsets = [0, 0], sizes = [8, 32], strides = [1, 1]} : vector<8x64xf32> to vector<8x32xf32>
    %136 = vector.extract_strided_slice %134 {offsets = [0, 32], sizes = [8, 32], strides = [1, 1]} : vector<8x64xf32> to vector<8x32xf32>
    %137 = vector.extract_strided_slice %124 {offsets = [0, 64], sizes = [8, 32], strides = [1, 1]} : vector<8x96xf32> to vector<8x32xf32>
    %138 = vector.extract_strided_slice %126 {offsets = [0, 64], sizes = [8, 32], strides = [1, 1]} : vector<8x96xf32> to vector<8x32xf32>
    %139 = arith.mulf %135, %138 : vector<8x32xf32>
    %140 = arith.addf %137, %139 : vector<8x32xf32>
    %141 = math.tanh %140 : vector<8x32xf32>
    %142 = arith.subf %95, %141 : vector<8x32xf32>
    %143 = arith.mulf %136, %142 : vector<8x32xf32>
    %144 = arith.addf %141, %143 : vector<8x32xf32>
    %c3_i32_49 = arith.constant 3 : i32
    %145 = arith.subi %c3_i32_49, %c2_i32 : i32
    %c8_i32_50 = arith.constant 8 : i32
    %146 = arith.muli %145, %c8_i32_50 : i32
    %147 = tpu.assume_multiple %146, 8 : i32
    %148 = arith.index_cast %147 : i32 to index
    %c0_51 = arith.constant 0 : index
    %149 = vector.load %arg17[%148, %c0_51] : memref<32x96xf32, #tpu.memory_space<vmem>>, vector<8x96xf32>
    %cst_52 = arith.constant dense<0.000000e+00> : vector<8x96xf32>
    %150 = tpu.matmul %120, %18, %cst_52 {dimension_numbers = #tpu.dot_dimension_numbers<[1], [0], [0], [1], [0, 0, 1, 1], [], []>} : vector<8x32xf32>, vector<32x96xf32>, vector<8x96xf32> -> vector<8x96xf32>
    %151 = arith.addf %150, %24 : vector<8x96xf32>
    %152 = vector.extract_strided_slice %149 {offsets = [0, 0], sizes = [8, 64], strides = [1, 1]} : vector<8x96xf32> to vector<8x64xf32>
    %153 = vector.extract_strided_slice %151 {offsets = [0, 0], sizes = [8, 64], strides = [1, 1]} : vector<8x96xf32> to vector<8x64xf32>
    %154 = arith.addf %152, %153 : vector<8x64xf32>
    %155 = arith.negf %154 : vector<8x64xf32>
    %156 = math.exp %155 : vector<8x64xf32>
    %cst_53 = arith.constant 1.000000e+00 : f32
    %157 = vector.broadcast %cst_53 : f32 to vector<8x64xf32>
    %158 = arith.addf %157, %156 : vector<8x64xf32>
    %159 = arith.divf %157, %158 : vector<8x64xf32>
    %160 = vector.extract_strided_slice %159 {offsets = [0, 0], sizes = [8, 32], strides = [1, 1]} : vector<8x64xf32> to vector<8x32xf32>
    %161 = vector.extract_strided_slice %159 {offsets = [0, 32], sizes = [8, 32], strides = [1, 1]} : vector<8x64xf32> to vector<8x32xf32>
    %162 = vector.extract_strided_slice %149 {offsets = [0, 64], sizes = [8, 32], strides = [1, 1]} : vector<8x96xf32> to vector<8x32xf32>
    %163 = vector.extract_strided_slice %151 {offsets = [0, 64], sizes = [8, 32], strides = [1, 1]} : vector<8x96xf32> to vector<8x32xf32>
    %164 = arith.mulf %160, %163 : vector<8x32xf32>
    %165 = arith.addf %162, %164 : vector<8x32xf32>
    %166 = math.tanh %165 : vector<8x32xf32>
    %167 = arith.subf %120, %166 : vector<8x32xf32>
    %168 = arith.mulf %161, %167 : vector<8x32xf32>
    %169 = arith.addf %166, %168 : vector<8x32xf32>
    %c3_i32_54 = arith.constant 3 : i32
    %c8_i32_55 = arith.constant 8 : i32
    %170 = arith.muli %c3_i32_54, %c8_i32_55 : i32
    %171 = tpu.assume_multiple %170, 8 : i32
    %172 = arith.index_cast %171 : i32 to index
    %c0_56 = arith.constant 0 : index
    %173 = vector.load %arg16[%172, %c0_56] : memref<32x96xf32, #tpu.memory_space<vmem>>, vector<8x96xf32>
    %cst_57 = arith.constant dense<0.000000e+00> : vector<8x96xf32>
    %174 = tpu.matmul %144, %17, %cst_57 {dimension_numbers = #tpu.dot_dimension_numbers<[1], [0], [0], [1], [0, 0, 1, 1], [], []>} : vector<8x32xf32>, vector<32x96xf32>, vector<8x96xf32> -> vector<8x96xf32>
    %175 = arith.addf %174, %21 : vector<8x96xf32>
    %176 = vector.extract_strided_slice %173 {offsets = [0, 0], sizes = [8, 64], strides = [1, 1]} : vector<8x96xf32> to vector<8x64xf32>
    %177 = vector.extract_strided_slice %175 {offsets = [0, 0], sizes = [8, 64], strides = [1, 1]} : vector<8x96xf32> to vector<8x64xf32>
    %178 = arith.addf %176, %177 : vector<8x64xf32>
    %179 = arith.negf %178 : vector<8x64xf32>
    %180 = math.exp %179 : vector<8x64xf32>
    %cst_58 = arith.constant 1.000000e+00 : f32
    %181 = vector.broadcast %cst_58 : f32 to vector<8x64xf32>
    %182 = arith.addf %181, %180 : vector<8x64xf32>
    %183 = arith.divf %181, %182 : vector<8x64xf32>
    %184 = vector.extract_strided_slice %183 {offsets = [0, 0], sizes = [8, 32], strides = [1, 1]} : vector<8x64xf32> to vector<8x32xf32>
    %185 = vector.extract_strided_slice %183 {offsets = [0, 32], sizes = [8, 32], strides = [1, 1]} : vector<8x64xf32> to vector<8x32xf32>
    %186 = vector.extract_strided_slice %173 {offsets = [0, 64], sizes = [8, 32], strides = [1, 1]} : vector<8x96xf32> to vector<8x32xf32>
    %187 = vector.extract_strided_slice %175 {offsets = [0, 64], sizes = [8, 32], strides = [1, 1]} : vector<8x96xf32> to vector<8x32xf32>
    %188 = arith.mulf %184, %187 : vector<8x32xf32>
    %189 = arith.addf %186, %188 : vector<8x32xf32>
    %190 = math.tanh %189 : vector<8x32xf32>
    %191 = arith.subf %144, %190 : vector<8x32xf32>
    %192 = arith.mulf %185, %191 : vector<8x32xf32>
    %193 = arith.addf %190, %192 : vector<8x32xf32>
    %c3_i32_59 = arith.constant 3 : i32
    %194 = arith.subi %c3_i32_59, %c3_i32_54 : i32
    %c8_i32_60 = arith.constant 8 : i32
    %195 = arith.muli %194, %c8_i32_60 : i32
    %196 = tpu.assume_multiple %195, 8 : i32
    %197 = arith.index_cast %196 : i32 to index
    %c0_61 = arith.constant 0 : index
    %198 = vector.load %arg17[%197, %c0_61] : memref<32x96xf32, #tpu.memory_space<vmem>>, vector<8x96xf32>
    %cst_62 = arith.constant dense<0.000000e+00> : vector<8x96xf32>
    %199 = tpu.matmul %169, %18, %cst_62 {dimension_numbers = #tpu.dot_dimension_numbers<[1], [0], [0], [1], [0, 0, 1, 1], [], []>} : vector<8x32xf32>, vector<32x96xf32>, vector<8x96xf32> -> vector<8x96xf32>
    %200 = arith.addf %199, %24 : vector<8x96xf32>
    %201 = vector.extract_strided_slice %198 {offsets = [0, 0], sizes = [8, 64], strides = [1, 1]} : vector<8x96xf32> to vector<8x64xf32>
    %202 = vector.extract_strided_slice %200 {offsets = [0, 0], sizes = [8, 64], strides = [1, 1]} : vector<8x96xf32> to vector<8x64xf32>
    %203 = arith.addf %201, %202 : vector<8x64xf32>
    %204 = arith.negf %203 : vector<8x64xf32>
    %205 = math.exp %204 : vector<8x64xf32>
    %cst_63 = arith.constant 1.000000e+00 : f32
    %206 = vector.broadcast %cst_63 : f32 to vector<8x64xf32>
    %207 = arith.addf %206, %205 : vector<8x64xf32>
    %208 = arith.divf %206, %207 : vector<8x64xf32>
    %209 = vector.extract_strided_slice %208 {offsets = [0, 0], sizes = [8, 32], strides = [1, 1]} : vector<8x64xf32> to vector<8x32xf32>
    %210 = vector.extract_strided_slice %208 {offsets = [0, 32], sizes = [8, 32], strides = [1, 1]} : vector<8x64xf32> to vector<8x32xf32>
    %211 = vector.extract_strided_slice %198 {offsets = [0, 64], sizes = [8, 32], strides = [1, 1]} : vector<8x96xf32> to vector<8x32xf32>
    %212 = vector.extract_strided_slice %200 {offsets = [0, 64], sizes = [8, 32], strides = [1, 1]} : vector<8x96xf32> to vector<8x32xf32>
    %213 = arith.mulf %209, %212 : vector<8x32xf32>
    %214 = arith.addf %211, %213 : vector<8x32xf32>
    %215 = math.tanh %214 : vector<8x32xf32>
    %216 = arith.subf %169, %215 : vector<8x32xf32>
    %217 = arith.mulf %210, %216 : vector<8x32xf32>
    %218 = arith.addf %215, %217 : vector<8x32xf32>
    %c3_i32_64 = arith.constant 3 : i32
    %c0_65 = arith.constant 0 : index
    %c0_66 = arith.constant 0 : index
    %219 = vector.load %arg18[%c0_65, %c0_66] : memref<8x32xf32, #tpu.memory_space<vmem>>, vector<8x32xf32>
    tpu.vector_store %arg18[%c0_65, %c0_66], %193 {strides = array<i32>} : memref<8x32xf32, #tpu.memory_space<vmem>>, vector<8x32xf32>,
    %c0_67 = arith.constant 0 : index
    %c0_68 = arith.constant 0 : index
    %220 = vector.load %arg19[%c0_67, %c0_68] : memref<8x32xf32, #tpu.memory_space<vmem>>, vector<8x32xf32>
    tpu.vector_store %arg19[%c0_67, %c0_68], %218 {strides = array<i32>} : memref<8x32xf32, #tpu.memory_space<vmem>>, vector<8x32xf32>,
    %c1_i32_69 = arith.constant 1 : i32
    %221 = arith.cmpi eq, %arg0, %c1_i32_69 : i32
    %222 = arith.extui %221 : i1 to i32
    %c0_i32_70 = arith.constant 0 : i32
    %223 = arith.cmpi ne, %222, %c0_i32_70 : i32
    scf.if %223 {
      %c0_71 = arith.constant 0 : index
      %c0_72 = arith.constant 0 : index
      %224 = vector.load %arg20[%c0_71, %c0_72] : memref<8x32xf32, #tpu.memory_space<vmem>>, vector<8x32xf32>
      %225 = tpu.concatenate %193, %224 in 1 : vector<8x32xf32>, vector<8x32xf32> -> vector<8x64xf32>
      %c0_73 = arith.constant 0 : index
      %c0_74 = arith.constant 0 : index
      %226 = vector.load %arg14[%c0_73, %c0_74] : memref<8x64xf32, #tpu.memory_space<vmem>>, vector<8x64xf32>
      tpu.vector_store %arg14[%c0_73, %c0_74], %225 {strides = array<i32>} : memref<8x64xf32, #tpu.memory_space<vmem>>, vector<8x64xf32>,
      %c0_75 = arith.constant 0 : index
      %c0_76 = arith.constant 0 : index
      %227 = vector.load %arg11[%c0_75, %c0_76] : memref<32x32xf32, #tpu.memory_space<vmem>>, vector<32x32xf32>
      %cst_77 = arith.constant dense<0.000000e+00> : vector<8x32xf32>
      %228 = tpu.matmul %193, %227, %cst_77 {dimension_numbers = #tpu.dot_dimension_numbers<[1], [0], [0], [1], [0, 0, 1, 1], [], []>} : vector<8x32xf32>, vector<32x32xf32>, vector<8x32xf32> -> vector<8x32xf32>
      %c0_78 = arith.constant 0 : index
      %c0_79 = arith.constant 0 : index
      %229 = vector.load %arg12[%c0_78, %c0_79] : memref<32x32xf32, #tpu.memory_space<vmem>>, vector<32x32xf32>
      %cst_80 = arith.constant dense<0.000000e+00> : vector<8x32xf32>
      %230 = tpu.matmul %218, %229, %cst_80 {dimension_numbers = #tpu.dot_dimension_numbers<[1], [0], [0], [1], [0, 0, 1, 1], [], []>} : vector<8x32xf32>, vector<32x32xf32>, vector<8x32xf32> -> vector<8x32xf32>
      %231 = arith.addf %228, %230 : vector<8x32xf32>
      %c0_81 = arith.constant 0 : index
      %c0_82 = arith.constant 0 : index
      %232 = vector.load %arg13[%c0_81, %c0_82] : memref<1x32xf32, #tpu.memory_space<vmem>>, vector<1x32xf32>
      %233 = vector.broadcast %232 : vector<1x32xf32> to vector<8x32xf32>
      %234 = arith.addf %231, %233 : vector<8x32xf32>
      %235 = math.tanh %234 : vector<8x32xf32>
      %c0_83 = arith.constant 0 : index
      %c0_84 = arith.constant 0 : index
      %236 = vector.load %arg15[%c0_83, %c0_84] : memref<8x32xf32, #tpu.memory_space<vmem>>, vector<8x32xf32>
      tpu.vector_store %arg15[%c0_83, %c0_84], %235 {strides = array<i32>} : memref<8x32xf32, #tpu.memory_space<vmem>>, vector<8x32xf32>,
    } else {
    }
    return
  }
  func.func @transform_0(%arg0: i32) -> (i32, i32) {
    %c0_i32 = arith.constant 0 : i32
    %c0_i32_0 = arith.constant 0 : i32
    return %arg0, %c0_i32 : i32, i32
  }
  func.func @transform_1(%arg0: i32) -> (i32, i32) {
    %c1_i32 = arith.constant 1 : i32
    %0 = arith.subi %c1_i32, %arg0 : i32
    %c0_i32 = arith.constant 0 : i32
    %c0_i32_0 = arith.constant 0 : i32
    return %0, %c0_i32 : i32, i32
  }
  func.func @transform_2(%arg0: i32) -> (i32, i32) {
    %c0_i32 = arith.constant 0 : i32
    %c0_i32_0 = arith.constant 0 : i32
    %c0_i32_1 = arith.constant 0 : i32
    return %c0_i32, %c0_i32_0 : i32, i32
  }
  func.func @transform_3(%arg0: i32) -> (i32, i32) {
    %c0_i32 = arith.constant 0 : i32
    %c0_i32_0 = arith.constant 0 : i32
    %c0_i32_1 = arith.constant 0 : i32
    return %c0_i32, %c0_i32_0 : i32, i32
  }
  func.func @transform_4(%arg0: i32) -> (i32, i32) {
    %c0_i32 = arith.constant 0 : i32
    %c0_i32_0 = arith.constant 0 : i32
    %c0_i32_1 = arith.constant 0 : i32
    return %c0_i32, %c0_i32_0 : i32, i32
  }
  func.func @transform_5(%arg0: i32) -> (i32, i32) {
    %c0_i32 = arith.constant 0 : i32
    %c0_i32_0 = arith.constant 0 : i32
    %c0_i32_1 = arith.constant 0 : i32
    return %c0_i32, %c0_i32_0 : i32, i32
  }
  func.func @transform_6(%arg0: i32) -> (i32, i32) {
    %c0_i32 = arith.constant 0 : i32
    %c0_i32_0 = arith.constant 0 : i32
    %c0_i32_1 = arith.constant 0 : i32
    return %c0_i32, %c0_i32_0 : i32, i32
  }
  func.func @transform_7(%arg0: i32) -> (i32, i32) {
    %c0_i32 = arith.constant 0 : i32
    %c0_i32_0 = arith.constant 0 : i32
    %c0_i32_1 = arith.constant 0 : i32
    return %c0_i32, %c0_i32_0 : i32, i32
  }
  func.func @transform_8(%arg0: i32) -> (i32, i32) {
    %c0_i32 = arith.constant 0 : i32
    %c0_i32_0 = arith.constant 0 : i32
    %c0_i32_1 = arith.constant 0 : i32
    return %c0_i32, %c0_i32_0 : i32, i32
  }
  func.func @transform_9(%arg0: i32) -> (i32, i32) {
    %c0_i32 = arith.constant 0 : i32
    %c0_i32_0 = arith.constant 0 : i32
    %c0_i32_1 = arith.constant 0 : i32
    return %c0_i32, %c0_i32_0 : i32, i32
  }
  func.func @transform_10(%arg0: i32) -> (i32, i32) {
    %c0_i32 = arith.constant 0 : i32
    %c0_i32_0 = arith.constant 0 : i32
    %c0_i32_1 = arith.constant 0 : i32
    return %c0_i32, %c0_i32_0 : i32, i32
  }
  func.func @transform_11(%arg0: i32) -> (i32, i32) {
    %c0_i32 = arith.constant 0 : i32
    %c0_i32_0 = arith.constant 0 : i32
    %c0_i32_1 = arith.constant 0 : i32
    return %c0_i32, %c0_i32_0 : i32, i32
  }
  func.func @transform_12(%arg0: i32) -> (i32, i32) {
    %c0_i32 = arith.constant 0 : i32
    %c0_i32_0 = arith.constant 0 : i32
    %c0_i32_1 = arith.constant 0 : i32
    return %c0_i32, %c0_i32_0 : i32, i32
  }
  func.func @transform_13(%arg0: i32) -> (i32, i32) {
    %c0_i32 = arith.constant 0 : i32
    %c0_i32_0 = arith.constant 0 : i32
    %c0_i32_1 = arith.constant 0 : i32
    return %c0_i32, %c0_i32_0 : i32, i32
  }
  func.func @transform_14(%arg0: i32) -> (i32, i32) {
    %c0_i32 = arith.constant 0 : i32
    %c0_i32_0 = arith.constant 0 : i32
    %c0_i32_1 = arith.constant 0 : i32
    return %c0_i32, %c0_i32_0 : i32, i32
  }
}

</mosaic_0001>

<llo_original>
// kernel: encoder_attention_forward.1
$region0: #{encoder_attention_forward.1}
  #allocation0 [shape = 'u32[]', space=smem, size = 0x4, offset = 0x4, fixed_abs, tag = 'smem constant byte address 0x4 - core index']
  #allocation1 [shape = 'u32[144,128]{1,0:T(1,128)}', space=vmem, size = 0x12000, scoped, tag = 'internal scratch']
  #allocation2 [shape = 'f32[32,96]{1,0:T(8,128)}', space=vmem, size = 0x4000, scoped, tag = 'scratch operand']
  #allocation3 [shape = 'f32[32,96]{1,0:T(8,128)}', space=vmem, size = 0x4000, scoped, tag = 'scratch operand']
  #allocation4 [shape = 'f32[8,32]{1,0:T(8,128)}', space=vmem, size = 0x1000, scoped, tag = 'scratch operand']
  #allocation5 [shape = 'f32[8,32]{1,0:T(8,128)}', space=vmem, size = 0x1000, scoped, tag = 'scratch operand']
  #allocation6 [shape = 'f32[8,32]{1,0:T(8,128)}', space=vmem, size = 0x1000, scoped, tag = 'scratch operand']
  %s0 = inlined_call_operand.vmem [shape: f32[64,16], index: 0, kind: input, shape index: {}, may-alias: {0,1}]
  %s1 = inlined_call_operand.vmem [shape: f32[64,16], index: 1, kind: input, shape index: {}, may-alias: {0,1}]
  %s2 = inlined_call_operand.vmem [shape: f32[16,96], index: 2, kind: input, shape index: {}]
  %s3 = inlined_call_operand.vmem [shape: f32[32,96], index: 3, kind: input, shape index: {}]
  %s4 = inlined_call_operand.vmem [shape: f32[1,96], index: 4, kind: input, shape index: {}]
  %s5 = inlined_call_operand.vmem [shape: f32[1,96], index: 5, kind: input, shape index: {}]
  %s6 = inlined_call_operand.hbm [shape: f32[16,96], index: 6, kind: input, shape index: {}]
  %s7 = inlined_call_operand.vmem [shape: f32[32,96], index: 7, kind: input, shape index: {}]
  %s8 = inlined_call_operand.hbm [shape: f32[1,96], index: 8, kind: input, shape index: {}]
  %s9 = inlined_call_operand.hbm [shape: f32[1,96], index: 9, kind: input, shape index: {}]
  %s10 = inlined_call_operand.vmem [shape: f32[32,32], index: 10, kind: input, shape index: {}]
  %s11 = inlined_call_operand.hbm [shape: f32[32,32], index: 11, kind: input, shape index: {}]
  %s12 = inlined_call_operand.hbm [shape: f32[1,32], index: 12, kind: input, shape index: {}]
  %s13 = inlined_call_operand.vmem [shape: f32[8,64], index: 13, kind: output, shape index: {0}]
  %s14 = inlined_call_operand.vmem [shape: f32[8,32], index: 14, kind: output, shape index: {1}]
  %15 = xla_tuple %s13, %s14
  %s16 = sld [smem:[#allocation0]]
  $region125: #{encoder_attention_forward.1} parent=0
    _
  %s18 = ssub.s32 1, %s16
  %s19 = scalar_select 0, %s18, %s16
  $region1: #{encoder_attention_forward.1} parent=0
    #allocation7 [shape = 'u8[8192]{0}', space=vmem, size = 0x2000, scoped, tag = 'input window, operand 6, single buffered']
    #allocation8 [shape = 's32[2]{0}', space=sflag, size = 0x8, scoped, tag = 'scoped memory for encoder_attention_forward.1']
    #allocation9 [shape = 'u8[512]{0}', space=vmem, size = 0x400, scoped, tag = 'input window, operand 8, single buffered']
    #allocation10 [shape = 's32[1]{0}', space=sflag, size = 0x4, scoped, tag = 'scoped memory for encoder_attention_forward.1']
    #allocation11 [shape = 'u8[512]{0}', space=vmem, size = 0x400, scoped, tag = 'input window, operand 9, single buffered']
    #allocation12 [shape = 'u8[16384]{0}', space=vmem, size = 0x4000, scoped, tag = 'input window, operand 11, single buffered']
    #allocation13 [shape = 's32[1]{0}', space=sflag, size = 0x4, scoped, tag = 'scoped memory for encoder_attention_forward.1']
    #allocation14 [shape = 'u8[512]{0}', space=vmem, size = 0x400, scoped, tag = 'input window, operand 12, single buffered']
    %20 = vsyncpa [#allocation8], 0
    %21 = vsyncpa [#allocation10], 0
    %22 = vsyncpa [#allocation13], 0
    loop: start=0, step=1, limit=4
    $region2: #{encoder_attention_forward.1} parent=1 // loop_pre_header
      _
    $region3: #{encoder_attention_forward.1} parent=1 // loop_header
      %s24 = sphi 0, %s28
      %p25 = scmp.ge.s32.totalorder %s24, 4
      %s34 = sphi 0, %s36
      %s37 = sphi 0, %s34
      %s38 = sphi 0, %s37
      %s54 = sphi 0, %s38
      %s62 = sphi 0, %s64
      %s65 = sphi 0, %s62
      %s66 = sphi 0, %s65
      %s82 = sphi 0, %s66
      %s86 = sphi 0, %s86
      %s88 = sphi 0, %s86
      %s89 = sphi 0, %s88
      %s103 = sphi 0, %s89
      %s107 = sphi 0, %s107
      %s109 = sphi 0, %s107
      %s110 = sphi 0, %s109
      %s124 = sphi 0, %s110
      %s128 = sphi 0, %s128
      %s130 = sphi 0, %s128
      %s131 = sphi 0, %s130
      %s145 = sphi 0, %s131
      %s149 = sphi 0, %s149
      %s151 = sphi 0, %s149
      %s152 = sphi 0, %s151
      %s166 = sphi 0, %s152
      %s170 = sphi 0, %s170
      %s172 = sphi 0, %s170
      %s173 = sphi 0, %s172
      %s187 = sphi 0, %s173
      %s191 = sphi 0, %s191
      %s193 = sphi 0, %s191
      %s194 = sphi 0, %s193
      %s208 = sphi 0, %s194
      %s212 = sphi 0, %s212
      %s214 = sphi 0, %s212
      %s215 = sphi 0, %s214
      %s229 = sphi 0, %s215
      %s233 = sphi 0, %s233
      %s235 = sphi 0, %s233
      %s236 = sphi 0, %s235
      %s250 = sphi 0, %s236
      %s254 = sphi 0, %s254
      %s256 = sphi 0, %s254
      %s257 = sphi 0, %s256
      %s271 = sphi 0, %s257
      %s275 = sphi 0, %s275
      %s277 = sphi 0, %s275
      %s278 = sphi 0, %s277
      %s292 = sphi 0, %s278
      %s296 = sphi 0, %s296
      %s298 = sphi 0, %s296
      %s299 = sphi 0, %s298
      %s313 = sphi 0, %s299
      %s317 = sphi 0, %s317
      %s319 = sphi 0, %s317
      %s320 = sphi 0, %s319
      %s334 = sphi 0, %s320
      %s338 = sphi 0, %s338
      %s340 = sphi 0, %s338
      %s341 = sphi 0, %s340
      %s355 = sphi 0, %s341
    $region4: #{encoder_attention_forward.1} parent=1 // loop_header_branch
      %27 = sbr.rel (%p25) target = $region8
    $region5: #{encoder_attention_forward.1} parent=1 // loop_body
      %s29 = ssub.s32 %s24, 1
      %s30 = ssub.s32 %s24, 2
      %s31 = sadd.s32 %s24, 1
      %s32 = ssub.s32 %s24, %s31
      %p33 = scmp.eq.s32.totalorder %s32, 0
      %s35 = sadd.s32 %s34, 1
      %s36 = scalar_select %p33, %s34, %s35
      %p39 = pneg %p33
      %p40 = scmp.eq.s32.totalorder %s24, 1
      %p41 = por %p39, %p40
      %p42 = scmp.ne.s32.totalorder %s34, %s37
      %p43 = scmp.eq.s32.totalorder %s24, 0
      %p44 = por %p42, %p43
      %p45 = scmp.ne.s32.totalorder %s34, %s37
      %p46 = scmp.eq.s32.totalorder %s29, 1
      %p47 = por %p45, %p46
      %p48 = scmp.ne.s32.totalorder %s37, %s38
      %p49 = scmp.eq.s32.totalorder %s29, 0
      %p50 = por %p48, %p49
      %p51 = scmp.ne.s32.totalorder %s37, %s38
      %p52 = scmp.eq.s32.totalorder %s30, 1
      %p53 = por %p51, %p52
      %p55 = scmp.ne.s32.totalorder %s38, %s54
      %p56 = scmp.eq.s32.totalorder %s30, 0
      %p57 = por %p55, %p56
      %s58 = ssub.s32 1, %s24
      %s59 = ssub.s32 1, %s31
      %s60 = ssub.s32 %s58, %s59
      %p61 = scmp.eq.s32.totalorder %s60, 0
      %s63 = sadd.s32 %s62, 1
      %s64 = scalar_select %p61, %s62, %s63
      %p67 = pneg %p61
      %p68 = scmp.eq.s32.totalorder %s24, 1
      %p69 = por %p67, %p68
      %p70 = scmp.ne.s32.totalorder %s62, %s65
      %p71 = scmp.eq.s32.totalorder %s24, 0
      %p72 = por %p70, %p71
      %p73 = scmp.ne.s32.totalorder %s62, %s65
      %p74 = scmp.eq.s32.totalorder %s29, 1
      %p75 = por %p73, %p74
      %p76 = scmp.ne.s32.totalorder %s65, %s66
      %p77 = scmp.eq.s32.totalorder %s29, 0
      %p78 = por %p76, %p77
      %p79 = scmp.ne.s32.totalorder %s65, %s66
      %p80 = scmp.eq.s32.totalorder %s30, 1
      %p81 = por %p79, %p80
      %p83 = scmp.ne.s32.totalorder %s66, %s82
      %p84 = scmp.eq.s32.totalorder %s30, 0
      %p85 = por %p83, %p84
      %s87 = sadd.s32 %s86, 1
      %p90 = scmp.eq.s32.totalorder %s24, 1
      %p91 = scmp.ne.s32.totalorder %s86, %s88
      %p92 = scmp.eq.s32.totalorder %s24, 0
      %p93 = por %p91, %p92
      %p94 = scmp.ne.s32.totalorder %s86, %s88
      %p95 = scmp.eq.s32.totalorder %s29, 1
      %p96 = por %p94, %p95
      %p97 = scmp.ne.s32.totalorder %s88, %s89
      %p98 = scmp.eq.s32.totalorder %s29, 0
      %p99 = por %p97, %p98
      %p100 = scmp.ne.s32.totalorder %s88, %s89
      %p101 = scmp.eq.s32.totalorder %s30, 1
      %p102 = por %p100, %p101
      %p104 = scmp.ne.s32.totalorder %s89, %s103
      %p105 = scmp.eq.s32.totalorder %s30, 0
      %p106 = por %p104, %p105
      %s108 = sadd.s32 %s107, 1
      %p111 = scmp.eq.s32.totalorder %s24, 1
      %p112 = scmp.ne.s32.totalorder %s107, %s109
      %p113 = scmp.eq.s32.totalorder %s24, 0
      %p114 = por %p112, %p113
      %p115 = scmp.ne.s32.totalorder %s107, %s109
      %p116 = scmp.eq.s32.totalorder %s29, 1
      %p117 = por %p115, %p116
      %p118 = scmp.ne.s32.totalorder %s109, %s110
      %p119 = scmp.eq.s32.totalorder %s29, 0
      %p120 = por %p118, %p119
      %p121 = scmp.ne.s32.totalorder %s109, %s110
      %p122 = scmp.eq.s32.totalorder %s30, 1
      %p123 = por %p121, %p122
      %p125 = scmp.ne.s32.totalorder %s110, %s124
      %p126 = scmp.eq.s32.totalorder %s30, 0
      %p127 = por %p125, %p126
      %s129 = sadd.s32 %s128, 1
      %p132 = scmp.eq.s32.totalorder %s24, 1
      %p133 = scmp.ne.s32.totalorder %s128, %s130
      %p134 = scmp.eq.s32.totalorder %s24, 0
      %p135 = por %p133, %p134
      %p136 = scmp.ne.s32.totalorder %s128, %s130
      %p137 = scmp.eq.s32.totalorder %s29, 1
      %p138 = por %p136, %p137
      %p139 = scmp.ne.s32.totalorder %s130, %s131
      %p140 = scmp.eq.s32.totalorder %s29, 0
      %p141 = por %p139, %p140
      %p142 = scmp.ne.s32.totalorder %s130, %s131
      %p143 = scmp.eq.s32.totalorder %s30, 1
      %p144 = por %p142, %p143
      %p146 = scmp.ne.s32.totalorder %s131, %s145
      %p147 = scmp.eq.s32.totalorder %s30, 0
      %p148 = por %p146, %p147
      %s150 = sadd.s32 %s149, 1
      %p153 = scmp.eq.s32.totalorder %s24, 1
      %p154 = scmp.ne.s32.totalorder %s149, %s151
      %p155 = scmp.eq.s32.totalorder %s24, 0
      %p156 = por %p154, %p155
      %p157 = scmp.ne.s32.totalorder %s149, %s151
      %p158 = scmp.eq.s32.totalorder %s29, 1
      %p159 = por %p157, %p158
      %p160 = scmp.ne.s32.totalorder %s151, %s152
      %p161 = scmp.eq.s32.totalorder %s29, 0
      %p162 = por %p160, %p161
      %p163 = scmp.ne.s32.totalorder %s151, %s152
      %p164 = scmp.eq.s32.totalorder %s30, 1
      %p165 = por %p163, %p164
      %p167 = scmp.ne.s32.totalorder %s152, %s166
      %p168 = scmp.eq.s32.totalorder %s30, 0
      %p169 = por %p167, %p168
      %s171 = sadd.s32 %s170, 1
      %p174 = scmp.eq.s32.totalorder %s24, 1
      %p175 = scmp.ne.s32.totalorder %s170, %s172
      %p176 = scmp.eq.s32.totalorder %s24, 0
      %p177 = por %p175, %p176
      %p178 = scmp.ne.s32.totalorder %s170, %s172
      %p179 = scmp.eq.s32.totalorder %s29, 1
      %p180 = por %p178, %p179
      %p181 = scmp.ne.s32.totalorder %s172, %s173
      %p182 = scmp.eq.s32.totalorder %s29, 0
      %p183 = por %p181, %p182
      %p184 = scmp.ne.s32.totalorder %s172, %s173
      %p185 = scmp.eq.s32.totalorder %s30, 1
      %p186 = por %p184, %p185
      %p188 = scmp.ne.s32.totalorder %s173, %s187
      %p189 = scmp.eq.s32.totalorder %s30, 0
      %p190 = por %p188, %p189
      %s192 = sadd.s32 %s191, 1
      %p195 = scmp.eq.s32.totalorder %s24, 1
      %p196 = scmp.ne.s32.totalorder %s191, %s193
      %p197 = scmp.eq.s32.totalorder %s24, 0
      %p198 = por %p196, %p197
      %p199 = scmp.ne.s32.totalorder %s191, %s193
      %p200 = scmp.eq.s32.totalorder %s29, 1
      %p201 = por %p199, %p200
      %p202 = scmp.ne.s32.totalorder %s193, %s194
      %p203 = scmp.eq.s32.totalorder %s29, 0
      %p204 = por %p202, %p203
      %p205 = scmp.ne.s32.totalorder %s193, %s194
      %p206 = scmp.eq.s32.totalorder %s30, 1
      %p207 = por %p205, %p206
      %p209 = scmp.ne.s32.totalorder %s194, %s208
      %p210 = scmp.eq.s32.totalorder %s30, 0
      %p211 = por %p209, %p210
      %s213 = sadd.s32 %s212, 1
      %p216 = scmp.eq.s32.totalorder %s24, 1
      %p217 = scmp.ne.s32.totalorder %s212, %s214
      %p218 = scmp.eq.s32.totalorder %s24, 0
      %p219 = por %p217, %p218
      %p220 = scmp.ne.s32.totalorder %s212, %s214
      %p221 = scmp.eq.s32.totalorder %s29, 1
      %p222 = por %p220, %p221
      %p223 = scmp.ne.s32.totalorder %s214, %s215
      %p224 = scmp.eq.s32.totalorder %s29, 0
      %p225 = por %p223, %p224
      %p226 = scmp.ne.s32.totalorder %s214, %s215
      %p227 = scmp.eq.s32.totalorder %s30, 1
      %p228 = por %p226, %p227
      %p230 = scmp.ne.s32.totalorder %s215, %s229
      %p231 = scmp.eq.s32.totalorder %s30, 0
      %p232 = por %p230, %p231
      %s234 = sadd.s32 %s233, 1
      %p237 = scmp.eq.s32.totalorder %s24, 1
      %p238 = scmp.ne.s32.totalorder %s233, %s235
      %p239 = scmp.eq.s32.totalorder %s24, 0
      %p240 = por %p238, %p239
      %p241 = scmp.ne.s32.totalorder %s233, %s235
      %p242 = scmp.eq.s32.totalorder %s29, 1
      %p243 = por %p241, %p242
      %p244 = scmp.ne.s32.totalorder %s235, %s236
      %p245 = scmp.eq.s32.totalorder %s29, 0
      %p246 = por %p244, %p245
      %p247 = scmp.ne.s32.totalorder %s235, %s236
      %p248 = scmp.eq.s32.totalorder %s30, 1
      %p249 = por %p247, %p248
      %p251 = scmp.ne.s32.totalorder %s236, %s250
      %p252 = scmp.eq.s32.totalorder %s30, 0
      %p253 = por %p251, %p252
      %s255 = sadd.s32 %s254, 1
      %p258 = scmp.eq.s32.totalorder %s24, 1
      %p259 = scmp.ne.s32.totalorder %s254, %s256
      %p260 = scmp.eq.s32.totalorder %s24, 0
      %p261 = por %p259, %p260
      %p262 = scmp.ne.s32.totalorder %s254, %s256
      %p263 = scmp.eq.s32.totalorder %s29, 1
      %p264 = por %p262, %p263
      %p265 = scmp.ne.s32.totalorder %s256, %s257
      %p266 = scmp.eq.s32.totalorder %s29, 0
      %p267 = por %p265, %p266
      %p268 = scmp.ne.s32.totalorder %s256, %s257
      %p269 = scmp.eq.s32.totalorder %s30, 1
      %p270 = por %p268, %p269
      %p272 = scmp.ne.s32.totalorder %s257, %s271
      %p273 = scmp.eq.s32.totalorder %s30, 0
      %p274 = por %p272, %p273
      %s276 = sadd.s32 %s275, 1
      %p279 = scmp.eq.s32.totalorder %s24, 1
      %p280 = scmp.ne.s32.totalorder %s275, %s277
      %p281 = scmp.eq.s32.totalorder %s24, 0
      %p282 = por %p280, %p281
      %p283 = scmp.ne.s32.totalorder %s275, %s277
      %p284 = scmp.eq.s32.totalorder %s29, 1
      %p285 = por %p283, %p284
      %p286 = scmp.ne.s32.totalorder %s277, %s278
      %p287 = scmp.eq.s32.totalorder %s29, 0
      %p288 = por %p286, %p287
      %p289 = scmp.ne.s32.totalorder %s277, %s278
      %p290 = scmp.eq.s32.totalorder %s30, 1
      %p291 = por %p289, %p290
      %p293 = scmp.ne.s32.totalorder %s278, %s292
      %p294 = scmp.eq.s32.totalorder %s30, 0
      %p295 = por %p293, %p294
      %s297 = sadd.s32 %s296, 1
      %p300 = scmp.eq.s32.totalorder %s24, 1
      %p301 = scmp.ne.s32.totalorder %s296, %s298
      %p302 = scmp.eq.s32.totalorder %s24, 0
      %p303 = por %p301, %p302
      %p304 = scmp.ne.s32.totalorder %s296, %s298
      %p305 = scmp.eq.s32.totalorder %s29, 1
      %p306 = por %p304, %p305
      %p307 = scmp.ne.s32.totalorder %s298, %s299
      %p308 = scmp.eq.s32.totalorder %s29, 0
      %p309 = por %p307, %p308
      %p310 = scmp.ne.s32.totalorder %s298, %s299
      %p311 = scmp.eq.s32.totalorder %s30, 1
      %p312 = por %p310, %p311
      %p314 = scmp.ne.s32.totalorder %s299, %s313
      %p315 = scmp.eq.s32.totalorder %s30, 0
      %p316 = por %p314, %p315
      %s318 = sadd.s32 %s317, 1
      %p321 = scmp.eq.s32.totalorder %s24, 1
      %p322 = scmp.ne.s32.totalorder %s317, %s319
      %p323 = scmp.eq.s32.totalorder %s24, 0
      %p324 = por %p322, %p323
      %p325 = scmp.ne.s32.totalorder %s317, %s319
      %p326 = scmp.eq.s32.totalorder %s29, 1
      %p327 = por %p325, %p326
      %p328 = scmp.ne.s32.totalorder %s319, %s320
      %p329 = scmp.eq.s32.totalorder %s29, 0
      %p330 = por %p328, %p329
      %p331 = scmp.ne.s32.totalorder %s319, %s320
      %p332 = scmp.eq.s32.totalorder %s30, 1
      %p333 = por %p331, %p332
      %p335 = scmp.ne.s32.totalorder %s320, %s334
      %p336 = scmp.eq.s32.totalorder %s30, 0
      %p337 = por %p335, %p336
      %s339 = sadd.s32 %s338, 1
      %p342 = scmp.eq.s32.totalorder %s24, 1
      %p343 = scmp.ne.s32.totalorder %s338, %s340
      %p344 = scmp.eq.s32.totalorder %s24, 0
      %p345 = por %p343, %p344
      %p346 = scmp.ne.s32.totalorder %s338, %s340
      %p347 = scmp.eq.s32.totalorder %s29, 1
      %p348 = por %p346, %p347
      %p349 = scmp.ne.s32.totalorder %s340, %s341
      %p350 = scmp.eq.s32.totalorder %s29, 0
      %p351 = por %p349, %p350
      %p352 = scmp.ne.s32.totalorder %s340, %s341
      %p353 = scmp.eq.s32.totalorder %s30, 1
      %p354 = por %p352, %p353
      %p356 = scmp.ne.s32.totalorder %s341, %s355
      %p357 = scmp.eq.s32.totalorder %s30, 0
      %p358 = por %p356, %p357
      %p359 = scmp.le.s32.totalorder 1, %s24
      %p360 = scmp.lt.s32.totalorder %s24, 3
      %p361 = pnand %p359, %p360
      %p362 = pneg %p361
      // Predicated region
      $region9: #{encoder_attention_forward.1} parent=5 // pred_check
        _
      $region10: #{encoder_attention_forward.1} parent=5 // pred_check_branch
        %364 = sbr.rel (%p361) target = $region12
      $region11: #{encoder_attention_forward.1} parent=5 // pred_region
        %s365 = ssub.s32 %s24, 1
        // Predicated region
        $region13: #{encoder_attention_forward.1} parent=11 // pred_check
          %p366 = pneg %p99
        $region14: #{encoder_attention_forward.1} parent=11 // pred_check_branch
          %368 = sbr.rel (%p366) target = $region16
        $region15: #{encoder_attention_forward.1} parent=11 // pred_region
          _
        $region16: #{encoder_attention_forward.1} parent=11 // pred_fallthru
          _
        // Predicated region
        $region17: #{encoder_attention_forward.1} parent=11 // pred_check
          %p369 = pneg %p120
        $region18: #{encoder_attention_forward.1} parent=11 // pred_check_branch
          %371 = sbr.rel (%p369) target = $region20
        $region19: #{encoder_attention_forward.1} parent=11 // pred_region
          _
        $region20: #{encoder_attention_forward.1} parent=11 // pred_fallthru
          _
        // Predicated region
        $region21: #{encoder_attention_forward.1} parent=11 // pred_check
          %p372 = pneg %p141
        $region22: #{encoder_attention_forward.1} parent=11 // pred_check_branch
          %374 = sbr.rel (%p372) target = $region24
        $region23: #{encoder_attention_forward.1} parent=11 // pred_region
          _
        $region24: #{encoder_attention_forward.1} parent=11 // pred_fallthru
          _
        // Predicated region
        $region25: #{encoder_attention_forward.1} parent=11 // pred_check
          %p375 = pneg %p162
        $region26: #{encoder_attention_forward.1} parent=11 // pred_check_branch
          %377 = sbr.rel (%p375) target = $region28
        $region27: #{encoder_attention_forward.1} parent=11 // pred_region
          _
        $region28: #{encoder_attention_forward.1} parent=11 // pred_fallthru
          _
        // Predicated region
        $region29: #{encoder_attention_forward.1} parent=11 // pred_check
          %p378 = pneg %p183
        $region30: #{encoder_attention_forward.1} parent=11 // pred_check_branch
          %380 = sbr.rel (%p378) target = $region32
        $region31: #{encoder_attention_forward.1} parent=11 // pred_region
          %s382 = ssub.s32 256, 256
          %383 = vsyncadd [#allocation8], %s382
          %s384 = sshll.u32 [#allocation7], 4
          %s385 = int_to_ptr.vmem [resolvable:$true] %s384
          %390 = dma.hbm_to_vmem [thread:$0]  %s6, 256, %s385, [#allocation8], 128, 128, 8
        $region32: #{encoder_attention_forward.1} parent=11 // pred_fallthru
          _
        // Predicated region
        $region33: #{encoder_attention_forward.1} parent=11 // pred_check
          %p391 = pneg %p204
        $region34: #{encoder_attention_forward.1} parent=11 // pred_check_branch
          %393 = sbr.rel (%p391) target = $region36
        $region35: #{encoder_attention_forward.1} parent=11 // pred_region
          _
        $region36: #{encoder_attention_forward.1} parent=11 // pred_fallthru
          _
        // Predicated region
        $region37: #{encoder_attention_forward.1} parent=11 // pred_check
          %p394 = pneg %p225
        $region38: #{encoder_attention_forward.1} parent=11 // pred_check_branch
          %396 = sbr.rel (%p394) target = $region40
        $region39: #{encoder_attention_forward.1} parent=11 // pred_region
          %s398 = ssub.s32 16, 16
          %399 = vsyncadd [#allocation10], %s398
          %s401 = sshll.u32 [#allocation9], 4
          %s402 = int_to_ptr.vmem [resolvable:$true] %s401
          %404 = dma.hbm_to_vmem [thread:$0]  %s8, 16, %s402, [#allocation10]
        $region40: #{encoder_attention_forward.1} parent=11 // pred_fallthru
          _
        // Predicated region
        $region41: #{encoder_attention_forward.1} parent=11 // pred_check
          %p405 = pneg %p246
        $region42: #{encoder_attention_forward.1} parent=11 // pred_check_branch
          %407 = sbr.rel (%p405) target = $region44
        $region43: #{encoder_attention_forward.1} parent=11 // pred_region
          %s409 = ssub.s32 16, 16
          %410 = vsyncadd [#allocation10], %s409
          %s412 = sshll.u32 [#allocation11], 4
          %s413 = int_to_ptr.vmem [resolvable:$true] %s412
          %415 = dma.hbm_to_vmem [thread:$0]  %s9, 16, %s413, [#allocation10]
        $region44: #{encoder_attention_forward.1} parent=11 // pred_fallthru
          _
        // Predicated region
        $region45: #{encoder_attention_forward.1} parent=11 // pred_check
          %p416 = pneg %p267
        $region46: #{encoder_attention_forward.1} parent=11 // pred_check_branch
          %418 = sbr.rel (%p416) target = $region48
        $region47: #{encoder_attention_forward.1} parent=11 // pred_region
          _
        $region48: #{encoder_attention_forward.1} parent=11 // pred_fallthru
          _
        // Predicated region
        $region49: #{encoder_attention_forward.1} parent=11 // pred_check
          %p419 = pneg %p288
        $region50: #{encoder_attention_forward.1} parent=11 // pred_check_branch
          %421 = sbr.rel (%p419) target = $region52
        $region51: #{encoder_attention_forward.1} parent=11 // pred_region
          %s423 = ssub.s32 512, 512
          %424 = vsyncadd [#allocation13], %s423
          %s425 = sshll.u32 [#allocation12], 4
          %s426 = int_to_ptr.vmem [resolvable:$true] %s425
          %431 = dma.hbm_to_vmem [thread:$0]  %s11, 512, %s426, [#allocation13], 128, 128, 8
        $region52: #{encoder_attention_forward.1} parent=11 // pred_fallthru
          _
        // Predicated region
        $region53: #{encoder_attention_forward.1} parent=11 // pred_check
          %p432 = pneg %p309
        $region54: #{encoder_attention_forward.1} parent=11 // pred_check_branch
          %434 = sbr.rel (%p432) target = $region56
        $region55: #{encoder_attention_forward.1} parent=11 // pred_region
          %s436 = ssub.s32 16, 16
          %437 = vsyncadd [#allocation13], %s436
          %s439 = sshll.u32 [#allocation14], 4
          %s440 = int_to_ptr.vmem [resolvable:$true] %s439
          %442 = dma.hbm_to_vmem [thread:$0]  %s12, 16, %s440, [#allocation13]
        $region56: #{encoder_attention_forward.1} parent=11 // pred_fallthru
          _
      $region12: #{encoder_attention_forward.1} parent=5 // pred_fallthru
        _
      %p443 = scmp.lt.s32.totalorder %s24, 2
      // Predicated region
      $region57: #{encoder_attention_forward.1} parent=5 // pred_check
        %p444 = pneg %p443
      $region58: #{encoder_attention_forward.1} parent=5 // pred_check_branch
        %446 = sbr.rel (%p444) target = $region60
      $region59: #{encoder_attention_forward.1} parent=5 // pred_region
        // Predicated region
        $region61: #{encoder_attention_forward.1} parent=59 // pred_check
          %p447 = pneg %p44
        $region62: #{encoder_attention_forward.1} parent=59 // pred_check_branch
          %449 = sbr.rel (%p447) target = $region64
        $region63: #{encoder_attention_forward.1} parent=59 // pred_region
          %s450 = smul.u32 4, %s24
          %p451 = scmp.lt.s32.totalorder %s450, 7
          %s452 = scalar_select %p451, %s450, 7
          %s453 = smul.addr %s452, 8
          %s454 = scalar_lea.vmem %s0, %s453
          %s455 = smul.u32 4, %s24
        $region64: #{encoder_attention_forward.1} parent=59 // pred_fallthru
          _
        // Predicated region
        $region65: #{encoder_attention_forward.1} parent=59 // pred_check
          %p456 = pneg %p72
        $region66: #{encoder_attention_forward.1} parent=59 // pred_check_branch
          %458 = sbr.rel (%p456) target = $region68
        $region67: #{encoder_attention_forward.1} parent=59 // pred_region
          %s459 = ssub.s32 1, %s24
          %s460 = smul.u32 4, %s459
          %p461 = scmp.lt.s32.totalorder %s460, 7
          %s462 = scalar_select %p461, %s460, 7
          %s463 = smul.addr %s462, 8
          %s464 = scalar_lea.vmem %s1, %s463
          %s465 = ssub.s32 1, %s24
          %s466 = smul.u32 4, %s465
        $region68: #{encoder_attention_forward.1} parent=59 // pred_fallthru
          _
      $region60: #{encoder_attention_forward.1} parent=5 // pred_fallthru
        _
      %p467 = scmp.le.s32.totalorder 1, %s24
      %p468 = scmp.lt.s32.totalorder %s24, 3
      %p469 = pnand %p467, %p468
      %p470 = pneg %p469
      // Predicated region
      $region69: #{encoder_attention_forward.1} parent=5 // pred_check
        _
      $region70: #{encoder_attention_forward.1} parent=5 // pred_check_branch
        %472 = sbr.rel (%p469) target = $region72
      $region71: #{encoder_attention_forward.1} parent=5 // pred_region
        %s473 = ssub.s32 %s24, 1
        // Predicated region
        $region73: #{encoder_attention_forward.1} parent=71 // pred_check
          %p474 = pneg %p183
        $region74: #{encoder_attention_forward.1} parent=71 // pred_check_branch
          %476 = sbr.rel (%p474) target = $region76
        $region75: #{encoder_attention_forward.1} parent=71 // pred_region
          %477 = dma.done [#allocation8], 256
        $region76: #{encoder_attention_forward.1} parent=71 // pred_fallthru
          _
        // Predicated region
        $region77: #{encoder_attention_forward.1} parent=71 // pred_check
          %p478 = pneg %p225
        $region78: #{encoder_attention_forward.1} parent=71 // pred_check_branch
          %480 = sbr.rel (%p478) target = $region80
        $region79: #{encoder_attention_forward.1} parent=71 // pred_region
          %481 = dma.done [#allocation10], 16
        $region80: #{encoder_attention_forward.1} parent=71 // pred_fallthru
          _
        // Predicated region
        $region81: #{encoder_attention_forward.1} parent=71 // pred_check
          %p482 = pneg %p246
        $region82: #{encoder_attention_forward.1} parent=71 // pred_check_branch
          %484 = sbr.rel (%p482) target = $region84
        $region83: #{encoder_attention_forward.1} parent=71 // pred_region
          %485 = dma.done [#allocation10], 16
        $region84: #{encoder_attention_forward.1} parent=71 // pred_fallthru
          _
        // Predicated region
        $region85: #{encoder_attention_forward.1} parent=71 // pred_check
          %p486 = pneg %p288
        $region86: #{encoder_attention_forward.1} parent=71 // pred_check_branch
          %488 = sbr.rel (%p486) target = $region88
        $region87: #{encoder_attention_forward.1} parent=71 // pred_region
          %489 = dma.done [#allocation13], 512
        $region88: #{encoder_attention_forward.1} parent=71 // pred_fallthru
          _
        // Predicated region
        $region89: #{encoder_attention_forward.1} parent=71 // pred_check
          %p490 = pneg %p309
        $region90: #{encoder_attention_forward.1} parent=71 // pred_check_branch
          %492 = sbr.rel (%p490) target = $region92
        $region91: #{encoder_attention_forward.1} parent=71 // pred_region
          %493 = dma.done [#allocation13], 16
        $region92: #{encoder_attention_forward.1} parent=71 // pred_fallthru
          _
        %s494 = smul.u32 4, %s29
        %p495 = scmp.lt.s32.totalorder %s494, 7
        %s496 = scalar_select %p495, %s494, 7
        %s497 = smul.addr %s496, 8
        %s498 = scalar_lea.vmem %s0, %s497
        %p499 = pneg %p50
        %p500 = pneg %p47
        %s501 = ssub.s32 1, %s29
        %s502 = smul.u32 4, %s501
        %p503 = scmp.lt.s32.totalorder %s502, 7
        %s504 = scalar_select %p503, %s502, 7
        %s505 = smul.addr %s504, 8
        %s506 = scalar_lea.vmem %s1, %s505
        %p507 = pneg %p78
        %p508 = pneg %p75
        %p509 = pneg %p99
        %p510 = pneg %p96
        %p511 = pneg %p120
        %p512 = pneg %p117
        %p513 = pneg %p141
        %p514 = pneg %p138
        %p515 = pneg %p162
        %p516 = pneg %p159
        %p517 = pneg %p183
        %p518 = pneg %p180
        %p519 = pneg %p204
        %p520 = pneg %p201
        %p521 = pneg %p225
        %p522 = pneg %p222
        %p523 = pneg %p246
        %p524 = pneg %p243
        %p525 = pneg %p267
        %p526 = pneg %p264
        %p527 = pneg %p288
        %p528 = pneg %p285
        %p529 = pneg %p309
        %p530 = pneg %p306
        %p531 = pneg %p330
        %p532 = pneg %p327
        %p533 = pneg %p351
        %p534 = pneg %p348
        %s535 = smul.u32 4, %s29
        %p536 = scmp.lt.s32.totalorder %s535, 7
        %s537 = scalar_select %p536, %s535, 7
        %s538 = smul.addr %s537, 8
        %s539 = scalar_lea.vmem %s0, %s538
        %s540 = smul.u32 4, %s29
        %s541 = ssub.s32 1, %s29
        %s542 = smul.u32 4, %s541
        %p543 = scmp.lt.s32.totalorder %s542, 7
        %s544 = scalar_select %p543, %s542, 7
        %s545 = smul.addr %s544, 8
        %s546 = scalar_lea.vmem %s1, %s545
        %s547 = ssub.s32 1, %s29
        %s548 = smul.u32 4, %s547
        %p549 = scmp.eq.s32.totalorder %s29, 0
        // Predicated region
        $region93: #{encoder_attention_forward.1} parent=71 // pred_check
          %p550 = pneg %p549
        $region94: #{encoder_attention_forward.1} parent=71 // pred_check_branch
          %552 = sbr.rel (%p550) target = $region96
        $region95: #{encoder_attention_forward.1} parent=71 // pred_region
          %vm553 = vcmask 261120
          %554 = vst.msk [vmem:[#allocation4] sm:$0xff] %vm553, 0.0
          %555 = vst.msk [vmem:[#allocation5] sm:$0xff] %vm553, 0.0
        $region96: #{encoder_attention_forward.1} parent=71 // pred_fallthru
          _
        %v556 = vld [vmem:[%s539] sm:$0xff]
        %v557 = vld [vmem:[%s539 + $0x8] sm:$0xff]
        %v558 = vld [vmem:[%s539 + $0x10] sm:$0xff]
        %v559 = vld [vmem:[%s539 + $0x18] sm:$0xff]
        %v560 = vld [vmem:[%s2] sm:$0xff]
        %v561 = vld [vmem:[%s2 + $0x8] sm:$0xff]
        %v562 = vld [vmem:[%s4] sm:$0x1]
        %v564 = vlaneseq
        %v565 = vshrl.u32 %v564, 7
        %v566 = vsub.s32 0, %v565
        %v567 = vrot.slane %v562, %v566
        %vm569 = vcmask 130048
        %v571 = vsel %vm569, %v556, 0
        %v574 = vsel %vm569, %v557, 0
        %v577 = vsel %vm569, %v558, 0
        %v580 = vsel %vm569, %v559, 0
        %582 = vmatprep.subr.mxu0 0.0
        %583 = vmatpush1.msra.mxu0 %v560
        %584 = vmatprep.subr.mxu0 0.0
        %585 = vmatpush1.msra.mxu0 %v561
        %586 = vmatprep.subr.mxu0 0.0
        %587 = vmatpush1.msra.mxu0 0.0
        %588 = vmatprep.subr.mxu0 0.0
        %589 = vmatpush1.msra.mxu0 0.0
        %590 = vmatprep.subr.mxu0 0.0
        %591 = vmatpush1.msra.mxu0 0.0
        %592 = vmatprep.subr.mxu0 0.0
        %593 = vmatpush1.msra.mxu0 0.0
        %594 = vmatprep.subr.mxu0 0.0
        %595 = vmatpush1.msra.mxu0 0.0
        %596 = vmatprep.subr.mxu0 0.0
        %597 = vmatpush1.msra.mxu0 0.0
        %598 = vmatprep.subr.mxu0 0.0
        %599 = vmatpush1.msra.mxu0 0.0
        %600 = vmatprep.subr.mxu0 0.0
        %601 = vmatpush1.msra.mxu0 0.0
        %602 = vmatprep.subr.mxu0 0.0
        %603 = vmatpush1.msra.mxu0 0.0
        %604 = vmatprep.subr.mxu0 0.0
        %605 = vmatpush1.msra.mxu0 0.0
        %606 = vmatprep.subr.mxu0 0.0
        %607 = vmatpush1.msra.mxu0 0.0
        %608 = vmatprep.subr.mxu0 0.0
        %609 = vmatpush1.msra.mxu0 0.0
        %610 = vmatprep.subr.mxu0 0.0
        %611 = vmatpush1.msra.mxu0 0.0
        %612 = vmatprep.subr.mxu0 0.0
        %613 = vmatpush1.msra.mxu0 0.0
        %614 = vmatprep.subr.mxu0 0.0
        %615 = vmatpush1.msra.mxu0 0.0
        %616 = vmatprep.subr.mxu0 0.0
        %617 = vmatpush1.msra.mxu0 0.0
        %618 = vmatprep.subr.mxu0 0.0
        %619 = vmatpush1.msra.mxu0 0.0
        %620 = vmatprep.subr.mxu0 0.0
        %621 = vmatpush1.msra.mxu0 0.0
        %622 = vmatprep.subr.mxu0 0.0
        %623 = vmatpush1.msra.mxu0 0.0
        %624 = vmatprep.subr.mxu0 0.0
        %625 = vmatpush1.msra.mxu0 0.0
        %626 = vmatprep.subr.mxu0 0.0
        %627 = vmatpush1.msra.mxu0 0.0
        %628 = vmatprep.subr.mxu0 0.0
        %629 = vmatpush1.msra.mxu0 0.0
        %630 = vmatprep.subr.mxu0 0.0
        %631 = vmatpush1.msra.mxu0 0.0
        %632 = vmatprep.subr.mxu0 0.0
        %633 = vmatpush1.msra.mxu0 0.0
        %634 = vmatprep.subr.mxu0 0.0
        %635 = vmatpush1.msra.mxu0 0.0
        %636 = vmatprep.subr.mxu0 0.0
        %637 = vmatpush1.msra.mxu0 0.0
        %638 = vmatprep.subr.mxu0 0.0
        %639 = vmatpush1.msra.mxu0 0.0
        %640 = vmatprep.subr.mxu0 0.0
        %641 = vmatpush1.msra.mxu0 0.0
        %642 = vmatprep.subr.mxu0 0.0
        %643 = vmatpush1.msra.mxu0 0.0
        %644 = vmatprep.subr.mxu0 0.0
        %645 = vmatpush1.msra.mxu0 0.0
        %646 = vmatprep.mubr.f32.mxu0 0.0
        %647 = vmatmul.mubr.f32.gmra.mrb[0].mxu0 %v571
        %v648 = vpop.f32.mrb[0].mxu0
        %v649 = vadd.f32 %v567, %v648
        %v650 = vpop.f32.mrb[0].mxu0
        %651 = vmatprep.mubr.f32.mxu0 0.0
        %652 = vmatmul.mubr.f32.gmra.mrb[0].mxu0 %v574
        %v653 = vpop.f32.mrb[0].mxu0
        %v654 = vadd.f32 %v567, %v653
        %v655 = vpop.f32.mrb[0].mxu0
        %656 = vmatprep.mubr.f32.mxu0 0.0
        %657 = vmatmul.mubr.f32.gmra.mrb[0].mxu0 %v577
        %v658 = vpop.f32.mrb[0].mxu0
        %v659 = vadd.f32 %v567, %v658
        %v660 = vpop.f32.mrb[0].mxu0
        %661 = vmatprep.mubr.f32.mxu0 0.0
        %662 = vmatmul.mubr.f32.gmra.mrb[0].mxu0 %v580
        %v663 = vpop.f32.mrb[0].mxu0
        %v664 = vadd.f32 %v567, %v663
        %v665 = vpop.f32.mrb[0].mxu0
        %666 = vdwg.mxu0
        %vm667 = vcmask 785408
        %668 = vst.msk [vmem:[#allocation2] sm:$0xff] %vm667, %v649
        %669 = vst.msk [vmem:[#allocation2 + $0x8] sm:$0xff] %vm667, %v654
        %670 = vst.msk [vmem:[#allocation2 + $0x10] sm:$0xff] %vm667, %v659
        %671 = vst.msk [vmem:[#allocation2 + $0x18] sm:$0xff] %vm667, %v664
        %v672 = vld [vmem:[%s546] sm:$0xff]
        %v673 = vld [vmem:[%s546 + $0x8] sm:$0xff]
        %v674 = vld [vmem:[%s546 + $0x10] sm:$0xff]
        %v675 = vld [vmem:[%s546 + $0x18] sm:$0xff]
        %v676 = vld [vmem:[#allocation7] sm:$0xff]
        %v677 = vld [vmem:[#allocation7 + $0x8] sm:$0xff]
        %v678 = vld [vmem:[#allocation9] sm:$0x1]
        %v680 = vlaneseq
        %v681 = vshrl.u32 %v680, 7
        %v682 = vsub.s32 0, %v681
        %v683 = vrot.slane %v678, %v682
        %v686 = vsel %vm569, %v672, 0
        %v689 = vsel %vm569, %v673, 0
        %v692 = vsel %vm569, %v674, 0
        %v695 = vsel %vm569, %v675, 0
        %697 = vmatprep.subr.mxu0 0.0
        %698 = vmatpush1.msra.mxu0 %v676
        %699 = vmatprep.subr.mxu0 0.0
        %700 = vmatpush1.msra.mxu0 %v677
        %701 = vmatprep.subr.mxu0 0.0
        %702 = vmatpush1.msra.mxu0 0.0
        %703 = vmatprep.subr.mxu0 0.0
        %704 = vmatpush1.msra.mxu0 0.0
        %705 = vmatprep.subr.mxu0 0.0
        %706 = vmatpush1.msra.mxu0 0.0
        %707 = vmatprep.subr.mxu0 0.0
        %708 = vmatpush1.msra.mxu0 0.0
        %709 = vmatprep.subr.mxu0 0.0
        %710 = vmatpush1.msra.mxu0 0.0
        %711 = vmatprep.subr.mxu0 0.0
        %712 = vmatpush1.msra.mxu0 0.0
        %713 = vmatprep.subr.mxu0 0.0
        %714 = vmatpush1.msra.mxu0 0.0
        %715 = vmatprep.subr.mxu0 0.0
        %716 = vmatpush1.msra.mxu0 0.0
        %717 = vmatprep.subr.mxu0 0.0
        %718 = vmatpush1.msra.mxu0 0.0
        %719 = vmatprep.subr.mxu0 0.0
        %720 = vmatpush1.msra.mxu0 0.0
        %721 = vmatprep.subr.mxu0 0.0
        %722 = vmatpush1.msra.mxu0 0.0
        %723 = vmatprep.subr.mxu0 0.0
        %724 = vmatpush1.msra.mxu0 0.0
        %725 = vmatprep.subr.mxu0 0.0
        %726 = vmatpush1.msra.mxu0 0.0
        %727 = vmatprep.subr.mxu0 0.0
        %728 = vmatpush1.msra.mxu0 0.0
        %729 = vmatprep.subr.mxu0 0.0
        %730 = vmatpush1.msra.mxu0 0.0
        %731 = vmatprep.subr.mxu0 0.0
        %732 = vmatpush1.msra.mxu0 0.0
        %733 = vmatprep.subr.mxu0 0.0
        %734 = vmatpush1.msra.mxu0 0.0
        %735 = vmatprep.subr.mxu0 0.0
        %736 = vmatpush1.msra.mxu0 0.0
        %737 = vmatprep.subr.mxu0 0.0
        %738 = vmatpush1.msra.mxu0 0.0
        %739 = vmatprep.subr.mxu0 0.0
        %740 = vmatpush1.msra.mxu0 0.0
        %741 = vmatprep.subr.mxu0 0.0
        %742 = vmatpush1.msra.mxu0 0.0
        %743 = vmatprep.subr.mxu0 0.0
        %744 = vmatpush1.msra.mxu0 0.0
        %745 = vmatprep.subr.mxu0 0.0
        %746 = vmatpush1.msra.mxu0 0.0
        %747 = vmatprep.subr.mxu0 0.0
        %748 = vmatpush1.msra.mxu0 0.0
        %749 = vmatprep.subr.mxu0 0.0
        %750 = vmatpush1.msra.mxu0 0.0
        %751 = vmatprep.subr.mxu0 0.0
        %752 = vmatpush1.msra.mxu0 0.0
        %753 = vmatprep.subr.mxu0 0.0
        %754 = vmatpush1.msra.mxu0 0.0
        %755 = vmatprep.subr.mxu0 0.0
        %756 = vmatpush1.msra.mxu0 0.0
        %757 = vmatprep.subr.mxu0 0.0
        %758 = vmatpush1.msra.mxu0 0.0
        %759 = vmatprep.subr.mxu0 0.0
        %760 = vmatpush1.msra.mxu0 0.0
        %761 = vmatprep.mubr.f32.mxu0 0.0
        %762 = vmatmul.mubr.f32.gmra.mrb[0].mxu0 %v686
        %v763 = vpop.f32.mrb[0].mxu0
        %v764 = vadd.f32 %v683, %v763
        %v765 = vpop.f32.mrb[0].mxu0
        %766 = vmatprep.mubr.f32.mxu0 0.0
        %767 = vmatmul.mubr.f32.gmra.mrb[0].mxu0 %v689
        %v768 = vpop.f32.mrb[0].mxu0
        %v769 = vadd.f32 %v683, %v768
        %v770 = vpop.f32.mrb[0].mxu0
        %771 = vmatprep.mubr.f32.mxu0 0.0
        %772 = vmatmul.mubr.f32.gmra.mrb[0].mxu0 %v692
        %v773 = vpop.f32.mrb[0].mxu0
        %v774 = vadd.f32 %v683, %v773
        %v775 = vpop.f32.mrb[0].mxu0
        %776 = vmatprep.mubr.f32.mxu0 0.0
        %777 = vmatmul.mubr.f32.gmra.mrb[0].mxu0 %v695
        %v778 = vpop.f32.mrb[0].mxu0
        %v779 = vadd.f32 %v683, %v778
        %v780 = vpop.f32.mrb[0].mxu0
        %781 = vdwg.mxu0
        %782 = vst.msk [vmem:[#allocation3] sm:$0xff] %vm667, %v764
        %783 = vst.msk [vmem:[#allocation3 + $0x8] sm:$0xff] %vm667, %v769
        %784 = vst.msk [vmem:[#allocation3 + $0x10] sm:$0xff] %vm667, %v774
        %785 = vst.msk [vmem:[#allocation3 + $0x18] sm:$0xff] %vm667, %v779
        %v786 = vld [vmem:[%s3] sm:$0xff]
        %v787 = vld [vmem:[%s3 + $0x8] sm:$0xff]
        %v788 = vld [vmem:[%s3 + $0x10] sm:$0xff]
        %v789 = vld [vmem:[%s3 + $0x18] sm:$0xff]
        %v790 = vld [vmem:[%s7] sm:$0xff]
        %v791 = vld [vmem:[%s7 + $0x8] sm:$0xff]
        %v792 = vld [vmem:[%s7 + $0x10] sm:$0xff]
        %v793 = vld [vmem:[%s7 + $0x18] sm:$0xff]
        %v794 = vld [vmem:[%s5] sm:$0x1]
        %v796 = vlaneseq
        %v797 = vshrl.u32 %v796, 7
        %v798 = vsub.s32 0, %v797
        %v799 = vrot.slane %v794, %v798
        %v801 = vld [vmem:[#allocation11] sm:$0x1]
        %v803 = vlaneseq
        %v804 = vshrl.u32 %v803, 7
        %v805 = vsub.s32 0, %v804
        %v806 = vrot.slane %v801, %v805
        %v808 = vld [vmem:[#allocation4] sm:$0xff]
        %v809 = vld [vmem:[#allocation5] sm:$0xff]
        %v810 = vld [vmem:[#allocation2] sm:$0xff]
        %vm811 = vcmask 261120
        %v813 = vsel %vm811, %v808, 0
        %815 = vmatprep.subr.mxu0 0.0
        %816 = vmatpush1.msra.mxu0 %v786
        %817 = vmatprep.subr.mxu0 0.0
        %818 = vmatpush1.msra.mxu0 %v787
        %819 = vmatprep.subr.mxu0 0.0
        %820 = vmatpush1.msra.mxu0 %v788
        %821 = vmatprep.subr.mxu0 0.0
        %822 = vmatpush1.msra.mxu0 %v789
        %823 = vmatprep.subr.mxu0 0.0
        %824 = vmatpush1.msra.mxu0 0.0
        %825 = vmatprep.subr.mxu0 0.0
        %826 = vmatpush1.msra.mxu0 0.0
        %827 = vmatprep.subr.mxu0 0.0
        %828 = vmatpush1.msra.mxu0 0.0
        %829 = vmatprep.subr.mxu0 0.0
        %830 = vmatpush1.msra.mxu0 0.0
        %831 = vmatprep.subr.mxu0 0.0
        %832 = vmatpush1.msra.mxu0 0.0
        %833 = vmatprep.subr.mxu0 0.0
        %834 = vmatpush1.msra.mxu0 0.0
        %835 = vmatprep.subr.mxu0 0.0
        %836 = vmatpush1.msra.mxu0 0.0
        %837 = vmatprep.subr.mxu0 0.0
        %838 = vmatpush1.msra.mxu0 0.0
        %839 = vmatprep.subr.mxu0 0.0
        %840 = vmatpush1.msra.mxu0 0.0
        %841 = vmatprep.subr.mxu0 0.0
        %842 = vmatpush1.msra.mxu0 0.0
        %843 = vmatprep.subr.mxu0 0.0
        %844 = vmatpush1.msra.mxu0 0.0
        %845 = vmatprep.subr.mxu0 0.0
        %846 = vmatpush1.msra.mxu0 0.0
        %847 = vmatprep.subr.mxu0 0.0
        %848 = vmatpush1.msra.mxu0 0.0
        %849 = vmatprep.subr.mxu0 0.0
        %850 = vmatpush1.msra.mxu0 0.0
        %851 = vmatprep.subr.mxu0 0.0
        %852 = vmatpush1.msra.mxu0 0.0
        %853 = vmatprep.subr.mxu0 0.0
        %854 = vmatpush1.msra.mxu0 0.0
        %855 = vmatprep.subr.mxu0 0.0
        %856 = vmatpush1.msra.mxu0 0.0
        %857 = vmatprep.subr.mxu0 0.0
        %858 = vmatpush1.msra.mxu0 0.0
        %859 = vmatprep.subr.mxu0 0.0
        %860 = vmatpush1.msra.mxu0 0.0
        %861 = vmatprep.subr.mxu0 0.0
        %862 = vmatpush1.msra.mxu0 0.0
        %863 = vmatprep.subr.mxu0 0.0
        %864 = vmatpush1.msra.mxu0 0.0
        %865 = vmatprep.subr.mxu0 0.0
        %866 = vmatpush1.msra.mxu0 0.0
        %867 = vmatprep.subr.mxu0 0.0
        %868 = vmatpush1.msra.mxu0 0.0
        %869 = vmatprep.subr.mxu0 0.0
        %870 = vmatpush1.msra.mxu0 0.0
        %871 = vmatprep.subr.mxu0 0.0
        %872 = vmatpush1.msra.mxu0 0.0
        %873 = vmatprep.subr.mxu0 0.0
        %874 = vmatpush1.msra.mxu0 0.0
        %875 = vmatprep.subr.mxu0 0.0
        %876 = vmatpush1.msra.mxu0 0.0
        %877 = vmatprep.subr.mxu0 0.0
        %878 = vmatpush1.msra.mxu0 0.0
        %879 = vmatprep.mubr.f32.mxu0 0.0
        %880 = vmatmul.mubr.f32.gmra.mrb[0].mxu0 %v813
        %v881 = vpop.f32.mrb[0].mxu0
        %v882 = vadd.f32 %v799, %v881
        %v883 = vpop.f32.mrb[0].mxu0
        %884 = vdwg.mxu0
        %v885 = vadd.f32 %v810, %v882
        %v886 = vxor.u32 %v885, 2147483648
        %v887 = vmul.f32 %v886, 1.442695
        %v888 = vpow.pop %v887
        %v889 = vadd.f32 %v888, 1.0
        %v890 = vrcp.pop %v889
        %v891 = vmul.f32 1.0, %v890
        %893 = vrot.lane.b32.xlu0 %v882, 64
        %v894 = vpop.permute.xlu0 %893
        %v896 = vmul.f32 %v891, %v894
        %898 = vrot.lane.b32.xlu0 %v896, 64
        %v899 = vpop.permute.xlu0 %898
        %v901 = vadd.f32 %v810, %v899
        %v902 = vtanh.pop %v901
        %904 = vrot.lane.b32.xlu0 %v902, 64
        %v905 = vpop.permute.xlu0 %904
        %v907 = vsub.f32 %v808, %v905
        %909 = vrot.lane.b32.xlu0 %v907, 32
        %v910 = vpop.permute.xlu0 %909
        %v912 = vmul.f32 %v891, %v910
        %914 = vrot.lane.b32.xlu0 %v912, 32
        %v915 = vpop.permute.xlu0 %914
        %v917 = vadd.f32 %v902, %v915
        %v918 = vld [vmem:[#allocation3 + $0x18] sm:$0xff]
        %v920 = vsel %vm811, %v809, 0
        %922 = vmatprep.subr.mxu0 0.0
        %923 = vmatpush1.msra.mxu0 %v790
        %924 = vmatprep.subr.mxu0 0.0
        %925 = vmatpush1.msra.mxu0 %v791
        %926 = vmatprep.subr.mxu0 0.0
        %927 = vmatpush1.msra.mxu0 %v792
        %928 = vmatprep.subr.mxu0 0.0
        %929 = vmatpush1.msra.mxu0 %v793
        %930 = vmatprep.subr.mxu0 0.0
        %931 = vmatpush1.msra.mxu0 0.0
        %932 = vmatprep.subr.mxu0 0.0
        %933 = vmatpush1.msra.mxu0 0.0
        %934 = vmatprep.subr.mxu0 0.0
        %935 = vmatpush1.msra.mxu0 0.0
        %936 = vmatprep.subr.mxu0 0.0
        %937 = vmatpush1.msra.mxu0 0.0
        %938 = vmatprep.subr.mxu0 0.0
        %939 = vmatpush1.msra.mxu0 0.0
        %940 = vmatprep.subr.mxu0 0.0
        %941 = vmatpush1.msra.mxu0 0.0
        %942 = vmatprep.subr.mxu0 0.0
        %943 = vmatpush1.msra.mxu0 0.0
        %944 = vmatprep.subr.mxu0 0.0
        %945 = vmatpush1.msra.mxu0 0.0
        %946 = vmatprep.subr.mxu0 0.0
        %947 = vmatpush1.msra.mxu0 0.0
        %948 = vmatprep.subr.mxu0 0.0
        %949 = vmatpush1.msra.mxu0 0.0
        %950 = vmatprep.subr.mxu0 0.0
        %951 = vmatpush1.msra.mxu0 0.0
        %952 = vmatprep.subr.mxu0 0.0
        %953 = vmatpush1.msra.mxu0 0.0
        %954 = vmatprep.subr.mxu0 0.0
        %955 = vmatpush1.msra.mxu0 0.0
        %956 = vmatprep.subr.mxu0 0.0
        %957 = vmatpush1.msra.mxu0 0.0
        %958 = vmatprep.subr.mxu0 0.0
        %959 = vmatpush1.msra.mxu0 0.0
        %960 = vmatprep.subr.mxu0 0.0
        %961 = vmatpush1.msra.mxu0 0.0
        %962 = vmatprep.subr.mxu0 0.0
        %963 = vmatpush1.msra.mxu0 0.0
        %964 = vmatprep.subr.mxu0 0.0
        %965 = vmatpush1.msra.mxu0 0.0
        %966 = vmatprep.subr.mxu0 0.0
        %967 = vmatpush1.msra.mxu0 0.0
        %968 = vmatprep.subr.mxu0 0.0
        %969 = vmatpush1.msra.mxu0 0.0
        %970 = vmatprep.subr.mxu0 0.0
        %971 = vmatpush1.msra.mxu0 0.0
        %972 = vmatprep.subr.mxu0 0.0
        %973 = vmatpush1.msra.mxu0 0.0
        %974 = vmatprep.subr.mxu0 0.0
        %975 = vmatpush1.msra.mxu0 0.0
        %976 = vmatprep.subr.mxu0 0.0
        %977 = vmatpush1.msra.mxu0 0.0
        %978 = vmatprep.subr.mxu0 0.0
        %979 = vmatpush1.msra.mxu0 0.0
        %980 = vmatprep.subr.mxu0 0.0
        %981 = vmatpush1.msra.mxu0 0.0
        %982 = vmatprep.subr.mxu0 0.0
        %983 = vmatpush1.msra.mxu0 0.0
        %984 = vmatprep.subr.mxu0 0.0
        %985 = vmatpush1.msra.mxu0 0.0
        %986 = vmatprep.mubr.f32.mxu0 0.0
        %987 = vmatmul.mubr.f32.gmra.mrb[0].mxu0 %v920
        %v988 = vpop.f32.mrb[0].mxu0
        %v989 = vadd.f32 %v806, %v988
        %v990 = vpop.f32.mrb[0].mxu0
        %991 = vdwg.mxu0
        %v992 = vadd.f32 %v918, %v989
        %v993 = vxor.u32 %v992, 2147483648
        %v994 = vmul.f32 %v993, 1.442695
        %v995 = vpow.pop %v994
        %v996 = vadd.f32 %v995, 1.0
        %v997 = vrcp.pop %v996
        %v998 = vmul.f32 1.0, %v997
        %1000 = vrot.lane.b32.xlu0 %v989, 64
        %v1001 = vpop.permute.xlu0 %1000
        %v1003 = vmul.f32 %v998, %v1001
        %1005 = vrot.lane.b32.xlu0 %v1003, 64
        %v1006 = vpop.permute.xlu0 %1005
        %v1008 = vadd.f32 %v918, %v1006
        %v1009 = vtanh.pop %v1008
        %1011 = vrot.lane.b32.xlu0 %v1009, 64
        %v1012 = vpop.permute.xlu0 %1011
        %v1014 = vsub.f32 %v809, %v1012
        %1016 = vrot.lane.b32.xlu0 %v1014, 32
        %v1017 = vpop.permute.xlu0 %1016
        %v1019 = vmul.f32 %v998, %v1017
        %1021 = vrot.lane.b32.xlu0 %v1019, 32
        %v1022 = vpop.permute.xlu0 %1021
        %v1024 = vadd.f32 %v1009, %v1022
        // Predicated region
        $region97: #{encoder_attention_forward.1} parent=71 // pred_check
          %p1025 = pneg %p549
        $region98: #{encoder_attention_forward.1} parent=71 // pred_check_branch
          %1027 = sbr.rel (%p1025) target = $region100
        $region99: #{encoder_attention_forward.1} parent=71 // pred_region
          %1029 = vrot.lane.b32.xlu0 %v1024, 64
          %v1030 = vpop.permute.xlu0 %1029
          %1032 = vst.msk [vmem:[#allocation6] sm:$0xff] %vm811, %v1030
        $region100: #{encoder_attention_forward.1} parent=71 // pred_fallthru
          _
        %s1033 = scalar_lea.vmem [#allocation2], 8
        %v1034 = vld [vmem:[%s1033] sm:$0xff]
        %1036 = vrot.lane.b32.xlu0 %v917, 64
        %v1037 = vpop.permute.xlu0 %1036
        %v1038 = vsel %vm811, %v1037, 0
        %1040 = vmatprep.subr.mxu0 0.0
        %1041 = vmatpush1.msra.mxu0 %v786
        %1042 = vmatprep.subr.mxu0 0.0
        %1043 = vmatpush1.msra.mxu0 %v787
        %1044 = vmatprep.subr.mxu0 0.0
        %1045 = vmatpush1.msra.mxu0 %v788
        %1046 = vmatprep.subr.mxu0 0.0
        %1047 = vmatpush1.msra.mxu0 %v789
        %1048 = vmatprep.subr.mxu0 0.0
        %1049 = vmatpush1.msra.mxu0 0.0
        %1050 = vmatprep.subr.mxu0 0.0
        %1051 = vmatpush1.msra.mxu0 0.0
        %1052 = vmatprep.subr.mxu0 0.0
        %1053 = vmatpush1.msra.mxu0 0.0
        %1054 = vmatprep.subr.mxu0 0.0
        %1055 = vmatpush1.msra.mxu0 0.0
        %1056 = vmatprep.subr.mxu0 0.0
        %1057 = vmatpush1.msra.mxu0 0.0
        %1058 = vmatprep.subr.mxu0 0.0
        %1059 = vmatpush1.msra.mxu0 0.0
        %1060 = vmatprep.subr.mxu0 0.0
        %1061 = vmatpush1.msra.mxu0 0.0
        %1062 = vmatprep.subr.mxu0 0.0
        %1063 = vmatpush1.msra.mxu0 0.0
        %1064 = vmatprep.subr.mxu0 0.0
        %1065 = vmatpush1.msra.mxu0 0.0
        %1066 = vmatprep.subr.mxu0 0.0
        %1067 = vmatpush1.msra.mxu0 0.0
        %1068 = vmatprep.subr.mxu0 0.0
        %1069 = vmatpush1.msra.mxu0 0.0
        %1070 = vmatprep.subr.mxu0 0.0
        %1071 = vmatpush1.msra.mxu0 0.0
        %1072 = vmatprep.subr.mxu0 0.0
        %1073 = vmatpush1.msra.mxu0 0.0
        %1074 = vmatprep.subr.mxu0 0.0
        %1075 = vmatpush1.msra.mxu0 0.0
        %1076 = vmatprep.subr.mxu0 0.0
        %1077 = vmatpush1.msra.mxu0 0.0
        %1078 = vmatprep.subr.mxu0 0.0
        %1079 = vmatpush1.msra.mxu0 0.0
        %1080 = vmatprep.subr.mxu0 0.0
        %1081 = vmatpush1.msra.mxu0 0.0
        %1082 = vmatprep.subr.mxu0 0.0
        %1083 = vmatpush1.msra.mxu0 0.0
        %1084 = vmatprep.subr.mxu0 0.0
        %1085 = vmatpush1.msra.mxu0 0.0
        %1086 = vmatprep.subr.mxu0 0.0
        %1087 = vmatpush1.msra.mxu0 0.0
        %1088 = vmatprep.subr.mxu0 0.0
        %1089 = vmatpush1.msra.mxu0 0.0
        %1090 = vmatprep.subr.mxu0 0.0
        %1091 = vmatpush1.msra.mxu0 0.0
        %1092 = vmatprep.subr.mxu0 0.0
        %1093 = vmatpush1.msra.mxu0 0.0
        %1094 = vmatprep.subr.mxu0 0.0
        %1095 = vmatpush1.msra.mxu0 0.0
        %1096 = vmatprep.subr.mxu0 0.0
        %1097 = vmatpush1.msra.mxu0 0.0
        %1098 = vmatprep.subr.mxu0 0.0
        %1099 = vmatpush1.msra.mxu0 0.0
        %1100 = vmatprep.subr.mxu0 0.0
        %1101 = vmatpush1.msra.mxu0 0.0
        %1102 = vmatprep.subr.mxu0 0.0
        %1103 = vmatpush1.msra.mxu0 0.0
        %1104 = vmatprep.mubr.f32.mxu0 0.0
        %1105 = vmatmul.mubr.f32.gmra.mrb[0].mxu0 %v1038
        %v1106 = vpop.f32.mrb[0].mxu0
        %v1107 = vadd.f32 %v799, %v1106
        %v1108 = vpop.f32.mrb[0].mxu0
        %1109 = vdwg.mxu0
        %v1110 = vadd.f32 %v1034, %v1107
        %v1111 = vxor.u32 %v1110, 2147483648
        %v1112 = vmul.f32 %v1111, 1.442695
        %v1113 = vpow.pop %v1112
        %v1114 = vadd.f32 %v1113, 1.0
        %v1115 = vrcp.pop %v1114
        %v1116 = vmul.f32 1.0, %v1115
        %1118 = vrot.lane.b32.xlu0 %v1107, 64
        %v1119 = vpop.permute.xlu0 %1118
        %v1121 = vmul.f32 %v1116, %v1119
        %1123 = vrot.lane.b32.xlu0 %v1121, 64
        %v1124 = vpop.permute.xlu0 %1123
        %v1126 = vadd.f32 %v1034, %v1124
        %v1127 = vtanh.pop %v1126
        %v1128 = vsub.f32 %v917, %v1127
        %1130 = vrot.lane.b32.xlu0 %v1128, 96
        %v1131 = vpop.permute.xlu0 %1130
        %v1133 = vmul.f32 %v1116, %v1131
        %1135 = vrot.lane.b32.xlu0 %v1133, 32
        %v1136 = vpop.permute.xlu0 %1135
        %v1138 = vadd.f32 %v1127, %v1136
        %s1139 = scalar_lea.vmem [#allocation3], 16
        %v1140 = vld [vmem:[%s1139] sm:$0xff]
        %1142 = vrot.lane.b32.xlu0 %v1024, 64
        %v1143 = vpop.permute.xlu0 %1142
        %v1144 = vsel %vm811, %v1143, 0
        %1146 = vmatprep.subr.mxu0 0.0
        %1147 = vmatpush1.msra.mxu0 %v790
        %1148 = vmatprep.subr.mxu0 0.0
        %1149 = vmatpush1.msra.mxu0 %v791
        %1150 = vmatprep.subr.mxu0 0.0
        %1151 = vmatpush1.msra.mxu0 %v792
        %1152 = vmatprep.subr.mxu0 0.0
        %1153 = vmatpush1.msra.mxu0 %v793
        %1154 = vmatprep.subr.mxu0 0.0
        %1155 = vmatpush1.msra.mxu0 0.0
        %1156 = vmatprep.subr.mxu0 0.0
        %1157 = vmatpush1.msra.mxu0 0.0
        %1158 = vmatprep.subr.mxu0 0.0
        %1159 = vmatpush1.msra.mxu0 0.0
        %1160 = vmatprep.subr.mxu0 0.0
        %1161 = vmatpush1.msra.mxu0 0.0
        %1162 = vmatprep.subr.mxu0 0.0
        %1163 = vmatpush1.msra.mxu0 0.0
        %1164 = vmatprep.subr.mxu0 0.0
        %1165 = vmatpush1.msra.mxu0 0.0
        %1166 = vmatprep.subr.mxu0 0.0
        %1167 = vmatpush1.msra.mxu0 0.0
        %1168 = vmatprep.subr.mxu0 0.0
        %1169 = vmatpush1.msra.mxu0 0.0
        %1170 = vmatprep.subr.mxu0 0.0
        %1171 = vmatpush1.msra.mxu0 0.0
        %1172 = vmatprep.subr.mxu0 0.0
        %1173 = vmatpush1.msra.mxu0 0.0
        %1174 = vmatprep.subr.mxu0 0.0
        %1175 = vmatpush1.msra.mxu0 0.0
        %1176 = vmatprep.subr.mxu0 0.0
        %1177 = vmatpush1.msra.mxu0 0.0
        %1178 = vmatprep.subr.mxu0 0.0
        %1179 = vmatpush1.msra.mxu0 0.0
        %1180 = vmatprep.subr.mxu0 0.0
        %1181 = vmatpush1.msra.mxu0 0.0
        %1182 = vmatprep.subr.mxu0 0.0
        %1183 = vmatpush1.msra.mxu0 0.0
        %1184 = vmatprep.subr.mxu0 0.0
        %1185 = vmatpush1.msra.mxu0 0.0
        %1186 = vmatprep.subr.mxu0 0.0
        %1187 = vmatpush1.msra.mxu0 0.0
        %1188 = vmatprep.subr.mxu0 0.0
        %1189 = vmatpush1.msra.mxu0 0.0
        %1190 = vmatprep.subr.mxu0 0.0
        %1191 = vmatpush1.msra.mxu0 0.0
        %1192 = vmatprep.subr.mxu0 0.0
        %1193 = vmatpush1.msra.mxu0 0.0
        %1194 = vmatprep.subr.mxu0 0.0
        %1195 = vmatpush1.msra.mxu0 0.0
        %1196 = vmatprep.subr.mxu0 0.0
        %1197 = vmatpush1.msra.mxu0 0.0
        %1198 = vmatprep.subr.mxu0 0.0
        %1199 = vmatpush1.msra.mxu0 0.0
        %1200 = vmatprep.subr.mxu0 0.0
        %1201 = vmatpush1.msra.mxu0 0.0
        %1202 = vmatprep.subr.mxu0 0.0
        %1203 = vmatpush1.msra.mxu0 0.0
        %1204 = vmatprep.subr.mxu0 0.0
        %1205 = vmatpush1.msra.mxu0 0.0
        %1206 = vmatprep.subr.mxu0 0.0
        %1207 = vmatpush1.msra.mxu0 0.0
        %1208 = vmatprep.subr.mxu0 0.0
        %1209 = vmatpush1.msra.mxu0 0.0
        %1210 = vmatprep.mubr.f32.mxu0 0.0
        %1211 = vmatmul.mubr.f32.gmra.mrb[0].mxu0 %v1144
        %v1212 = vpop.f32.mrb[0].mxu0
        %v1213 = vadd.f32 %v806, %v1212
        %v1214 = vpop.f32.mrb[0].mxu0
        %1215 = vdwg.mxu0
        %v1216 = vadd.f32 %v1140, %v1213
        %v1217 = vxor.u32 %v1216, 2147483648
        %v1218 = vmul.f32 %v1217, 1.442695
        %v1219 = vpow.pop %v1218
        %v1220 = vadd.f32 %v1219, 1.0
        %v1221 = vrcp.pop %v1220
        %v1222 = vmul.f32 1.0, %v1221
        %1224 = vrot.lane.b32.xlu0 %v1213, 64
        %v1225 = vpop.permute.xlu0 %1224
        %v1227 = vmul.f32 %v1222, %v1225
        %1229 = vrot.lane.b32.xlu0 %v1227, 64
        %v1230 = vpop.permute.xlu0 %1229
        %v1232 = vadd.f32 %v1140, %v1230
        %v1233 = vtanh.pop %v1232
        %v1234 = vsub.f32 %v1024, %v1233
        %1236 = vrot.lane.b32.xlu0 %v1234, 96
        %v1237 = vpop.permute.xlu0 %1236
        %v1239 = vmul.f32 %v1222, %v1237
        %1241 = vrot.lane.b32.xlu0 %v1239, 32
        %v1242 = vpop.permute.xlu0 %1241
        %v1244 = vadd.f32 %v1233, %v1242
        %s1245 = scalar_lea.vmem [#allocation2], 16
        %v1246 = vld [vmem:[%s1245] sm:$0xff]
        %1248 = vrot.lane.b32.xlu0 %v1138, 64
        %v1249 = vpop.permute.xlu0 %1248
        %v1250 = vsel %vm811, %v1249, 0
        %1252 = vmatprep.subr.mxu0 0.0
        %1253 = vmatpush1.msra.mxu0 %v786
        %1254 = vmatprep.subr.mxu0 0.0
        %1255 = vmatpush1.msra.mxu0 %v787
        %1256 = vmatprep.subr.mxu0 0.0
        %1257 = vmatpush1.msra.mxu0 %v788
        %1258 = vmatprep.subr.mxu0 0.0
        %1259 = vmatpush1.msra.mxu0 %v789
        %1260 = vmatprep.subr.mxu0 0.0
        %1261 = vmatpush1.msra.mxu0 0.0
        %1262 = vmatprep.subr.mxu0 0.0
        %1263 = vmatpush1.msra.mxu0 0.0
        %1264 = vmatprep.subr.mxu0 0.0
        %1265 = vmatpush1.msra.mxu0 0.0
        %1266 = vmatprep.subr.mxu0 0.0
        %1267 = vmatpush1.msra.mxu0 0.0
        %1268 = vmatprep.subr.mxu0 0.0
        %1269 = vmatpush1.msra.mxu0 0.0
        %1270 = vmatprep.subr.mxu0 0.0
        %1271 = vmatpush1.msra.mxu0 0.0
        %1272 = vmatprep.subr.mxu0 0.0
        %1273 = vmatpush1.msra.mxu0 0.0
        %1274 = vmatprep.subr.mxu0 0.0
        %1275 = vmatpush1.msra.mxu0 0.0
        %1276 = vmatprep.subr.mxu0 0.0
        %1277 = vmatpush1.msra.mxu0 0.0
        %1278 = vmatprep.subr.mxu0 0.0
        %1279 = vmatpush1.msra.mxu0 0.0
        %1280 = vmatprep.subr.mxu0 0.0
        %1281 = vmatpush1.msra.mxu0 0.0
        %1282 = vmatprep.subr.mxu0 0.0
        %1283 = vmatpush1.msra.mxu0 0.0
        %1284 = vmatprep.subr.mxu0 0.0
        %1285 = vmatpush1.msra.mxu0 0.0
        %1286 = vmatprep.subr.mxu0 0.0
        %1287 = vmatpush1.msra.mxu0 0.0
        %1288 = vmatprep.subr.mxu0 0.0
        %1289 = vmatpush1.msra.mxu0 0.0
        %1290 = vmatprep.subr.mxu0 0.0
        %1291 = vmatpush1.msra.mxu0 0.0
        %1292 = vmatprep.subr.mxu0 0.0
        %1293 = vmatpush1.msra.mxu0 0.0
        %1294 = vmatprep.subr.mxu0 0.0
        %1295 = vmatpush1.msra.mxu0 0.0
        %1296 = vmatprep.subr.mxu0 0.0
        %1297 = vmatpush1.msra.mxu0 0.0
        %1298 = vmatprep.subr.mxu0 0.0
        %1299 = vmatpush1.msra.mxu0 0.0
        %1300 = vmatprep.subr.mxu0 0.0
        %1301 = vmatpush1.msra.mxu0 0.0
        %1302 = vmatprep.subr.mxu0 0.0
        %1303 = vmatpush1.msra.mxu0 0.0
        %1304 = vmatprep.subr.mxu0 0.0
        %1305 = vmatpush1.msra.mxu0 0.0
        %1306 = vmatprep.subr.mxu0 0.0
        %1307 = vmatpush1.msra.mxu0 0.0
        %1308 = vmatprep.subr.mxu0 0.0
        %1309 = vmatpush1.msra.mxu0 0.0
        %1310 = vmatprep.subr.mxu0 0.0
        %1311 = vmatpush1.msra.mxu0 0.0
        %1312 = vmatprep.subr.mxu0 0.0
        %1313 = vmatpush1.msra.mxu0 0.0
        %1314 = vmatprep.subr.mxu0 0.0
        %1315 = vmatpush1.msra.mxu0 0.0
        %1316 = vmatprep.mubr.f32.mxu0 0.0
        %1317 = vmatmul.mubr.f32.gmra.mrb[0].mxu0 %v1250
        %v1318 = vpop.f32.mrb[0].mxu0
        %v1319 = vadd.f32 %v799, %v1318
        %v1320 = vpop.f32.mrb[0].mxu0
        %1321 = vdwg.mxu0
        %v1322 = vadd.f32 %v1246, %v1319
        %v1323 = vxor.u32 %v1322, 2147483648
        %v1324 = vmul.f32 %v1323, 1.442695
        %v1325 = vpow.pop %v1324
        %v1326 = vadd.f32 %v1325, 1.0
        %v1327 = vrcp.pop %v1326
        %v1328 = vmul.f32 1.0, %v1327
        %1330 = vrot.lane.b32.xlu0 %v1319, 64
        %v1331 = vpop.permute.xlu0 %1330
        %v1333 = vmul.f32 %v1328, %v1331
        %1335 = vrot.lane.b32.xlu0 %v1333, 64
        %v1336 = vpop.permute.xlu0 %1335
        %v1338 = vadd.f32 %v1246, %v1336
        %v1339 = vtanh.pop %v1338
        %v1340 = vsub.f32 %v1138, %v1339
        %1342 = vrot.lane.b32.xlu0 %v1340, 96
        %v1343 = vpop.permute.xlu0 %1342
        %v1345 = vmul.f32 %v1328, %v1343
        %1347 = vrot.lane.b32.xlu0 %v1345, 32
        %v1348 = vpop.permute.xlu0 %1347
        %v1350 = vadd.f32 %v1339, %v1348
        %s1351 = scalar_lea.vmem [#allocation3], 8
        %v1352 = vld [vmem:[%s1351] sm:$0xff]
        %1354 = vrot.lane.b32.xlu0 %v1244, 64
        %v1355 = vpop.permute.xlu0 %1354
        %v1356 = vsel %vm811, %v1355, 0
        %1358 = vmatprep.subr.mxu0 0.0
        %1359 = vmatpush1.msra.mxu0 %v790
        %1360 = vmatprep.subr.mxu0 0.0
        %1361 = vmatpush1.msra.mxu0 %v791
        %1362 = vmatprep.subr.mxu0 0.0
        %1363 = vmatpush1.msra.mxu0 %v792
        %1364 = vmatprep.subr.mxu0 0.0
        %1365 = vmatpush1.msra.mxu0 %v793
        %1366 = vmatprep.subr.mxu0 0.0
        %1367 = vmatpush1.msra.mxu0 0.0
        %1368 = vmatprep.subr.mxu0 0.0
        %1369 = vmatpush1.msra.mxu0 0.0
        %1370 = vmatprep.subr.mxu0 0.0
        %1371 = vmatpush1.msra.mxu0 0.0
        %1372 = vmatprep.subr.mxu0 0.0
        %1373 = vmatpush1.msra.mxu0 0.0
        %1374 = vmatprep.subr.mxu0 0.0
        %1375 = vmatpush1.msra.mxu0 0.0
        %1376 = vmatprep.subr.mxu0 0.0
        %1377 = vmatpush1.msra.mxu0 0.0
        %1378 = vmatprep.subr.mxu0 0.0
        %1379 = vmatpush1.msra.mxu0 0.0
        %1380 = vmatprep.subr.mxu0 0.0
        %1381 = vmatpush1.msra.mxu0 0.0
        %1382 = vmatprep.subr.mxu0 0.0
        %1383 = vmatpush1.msra.mxu0 0.0
        %1384 = vmatprep.subr.mxu0 0.0
        %1385 = vmatpush1.msra.mxu0 0.0
        %1386 = vmatprep.subr.mxu0 0.0
        %1387 = vmatpush1.msra.mxu0 0.0
        %1388 = vmatprep.subr.mxu0 0.0
        %1389 = vmatpush1.msra.mxu0 0.0
        %1390 = vmatprep.subr.mxu0 0.0
        %1391 = vmatpush1.msra.mxu0 0.0
        %1392 = vmatprep.subr.mxu0 0.0
        %1393 = vmatpush1.msra.mxu0 0.0
        %1394 = vmatprep.subr.mxu0 0.0
        %1395 = vmatpush1.msra.mxu0 0.0
        %1396 = vmatprep.subr.mxu0 0.0
        %1397 = vmatpush1.msra.mxu0 0.0
        %1398 = vmatprep.subr.mxu0 0.0
        %1399 = vmatpush1.msra.mxu0 0.0
        %1400 = vmatprep.subr.mxu0 0.0
        %1401 = vmatpush1.msra.mxu0 0.0
        %1402 = vmatprep.subr.mxu0 0.0
        %1403 = vmatpush1.msra.mxu0 0.0
        %1404 = vmatprep.subr.mxu0 0.0
        %1405 = vmatpush1.msra.mxu0 0.0
        %1406 = vmatprep.subr.mxu0 0.0
        %1407 = vmatpush1.msra.mxu0 0.0
        %1408 = vmatprep.subr.mxu0 0.0
        %1409 = vmatpush1.msra.mxu0 0.0
        %1410 = vmatprep.subr.mxu0 0.0
        %1411 = vmatpush1.msra.mxu0 0.0
        %1412 = vmatprep.subr.mxu0 0.0
        %1413 = vmatpush1.msra.mxu0 0.0
        %1414 = vmatprep.subr.mxu0 0.0
        %1415 = vmatpush1.msra.mxu0 0.0
        %1416 = vmatprep.subr.mxu0 0.0
        %1417 = vmatpush1.msra.mxu0 0.0
        %1418 = vmatprep.subr.mxu0 0.0
        %1419 = vmatpush1.msra.mxu0 0.0
        %1420 = vmatprep.subr.mxu0 0.0
        %1421 = vmatpush1.msra.mxu0 0.0
        %1422 = vmatprep.mubr.f32.mxu0 0.0
        %1423 = vmatmul.mubr.f32.gmra.mrb[0].mxu0 %v1356
        %v1424 = vpop.f32.mrb[0].mxu0
        %v1425 = vadd.f32 %v806, %v1424
        %v1426 = vpop.f32.mrb[0].mxu0
        %1427 = vdwg.mxu0
        %v1428 = vadd.f32 %v1352, %v1425
        %v1429 = vxor.u32 %v1428, 2147483648
        %v1430 = vmul.f32 %v1429, 1.442695
        %v1431 = vpow.pop %v1430
        %v1432 = vadd.f32 %v1431, 1.0
        %v1433 = vrcp.pop %v1432
        %v1434 = vmul.f32 1.0, %v1433
        %1436 = vrot.lane.b32.xlu0 %v1425, 64
        %v1437 = vpop.permute.xlu0 %1436
        %v1439 = vmul.f32 %v1434, %v1437
        %1441 = vrot.lane.b32.xlu0 %v1439, 64
        %v1442 = vpop.permute.xlu0 %1441
        %v1444 = vadd.f32 %v1352, %v1442
        %v1445 = vtanh.pop %v1444
        %v1446 = vsub.f32 %v1244, %v1445
        %1448 = vrot.lane.b32.xlu0 %v1446, 96
        %v1449 = vpop.permute.xlu0 %1448
        %v1451 = vmul.f32 %v1434, %v1449
        %1453 = vrot.lane.b32.xlu0 %v1451, 32
        %v1454 = vpop.permute.xlu0 %1453
        %v1456 = vadd.f32 %v1445, %v1454
        %s1457 = scalar_lea.vmem [#allocation2], 24
        %v1458 = vld [vmem:[%s1457] sm:$0xff]
        %1460 = vrot.lane.b32.xlu0 %v1350, 64
        %v1461 = vpop.permute.xlu0 %1460
        %v1462 = vsel %vm811, %v1461, 0
        %1464 = vmatprep.subr.mxu0 0.0
        %1465 = vmatpush1.msra.mxu0 %v786
        %1466 = vmatprep.subr.mxu0 0.0
        %1467 = vmatpush1.msra.mxu0 %v787
        %1468 = vmatprep.subr.mxu0 0.0
        %1469 = vmatpush1.msra.mxu0 %v788
        %1470 = vmatprep.subr.mxu0 0.0
        %1471 = vmatpush1.msra.mxu0 %v789
        %1472 = vmatprep.subr.mxu0 0.0
        %1473 = vmatpush1.msra.mxu0 0.0
        %1474 = vmatprep.subr.mxu0 0.0
        %1475 = vmatpush1.msra.mxu0 0.0
        %1476 = vmatprep.subr.mxu0 0.0
        %1477 = vmatpush1.msra.mxu0 0.0
        %1478 = vmatprep.subr.mxu0 0.0
        %1479 = vmatpush1.msra.mxu0 0.0
        %1480 = vmatprep.subr.mxu0 0.0
        %1481 = vmatpush1.msra.mxu0 0.0
        %1482 = vmatprep.subr.mxu0 0.0
        %1483 = vmatpush1.msra.mxu0 0.0
        %1484 = vmatprep.subr.mxu0 0.0
        %1485 = vmatpush1.msra.mxu0 0.0
        %1486 = vmatprep.subr.mxu0 0.0
        %1487 = vmatpush1.msra.mxu0 0.0
        %1488 = vmatprep.subr.mxu0 0.0
        %1489 = vmatpush1.msra.mxu0 0.0
        %1490 = vmatprep.subr.mxu0 0.0
        %1491 = vmatpush1.msra.mxu0 0.0
        %1492 = vmatprep.subr.mxu0 0.0
        %1493 = vmatpush1.msra.mxu0 0.0
        %1494 = vmatprep.subr.mxu0 0.0
        %1495 = vmatpush1.msra.mxu0 0.0
        %1496 = vmatprep.subr.mxu0 0.0
        %1497 = vmatpush1.msra.mxu0 0.0
        %1498 = vmatprep.subr.mxu0 0.0
        %1499 = vmatpush1.msra.mxu0 0.0
        %1500 = vmatprep.subr.mxu0 0.0
        %1501 = vmatpush1.msra.mxu0 0.0
        %1502 = vmatprep.subr.mxu0 0.0
        %1503 = vmatpush1.msra.mxu0 0.0
        %1504 = vmatprep.subr.mxu0 0.0
        %1505 = vmatpush1.msra.mxu0 0.0
        %1506 = vmatprep.subr.mxu0 0.0
        %1507 = vmatpush1.msra.mxu0 0.0
        %1508 = vmatprep.subr.mxu0 0.0
        %1509 = vmatpush1.msra.mxu0 0.0
        %1510 = vmatprep.subr.mxu0 0.0
        %1511 = vmatpush1.msra.mxu0 0.0
        %1512 = vmatprep.subr.mxu0 0.0
        %1513 = vmatpush1.msra.mxu0 0.0
        %1514 = vmatprep.subr.mxu0 0.0
        %1515 = vmatpush1.msra.mxu0 0.0
        %1516 = vmatprep.subr.mxu0 0.0
        %1517 = vmatpush1.msra.mxu0 0.0
        %1518 = vmatprep.subr.mxu0 0.0
        %1519 = vmatpush1.msra.mxu0 0.0
        %1520 = vmatprep.subr.mxu0 0.0
        %1521 = vmatpush1.msra.mxu0 0.0
        %1522 = vmatprep.subr.mxu0 0.0
        %1523 = vmatpush1.msra.mxu0 0.0
        %1524 = vmatprep.subr.mxu0 0.0
        %1525 = vmatpush1.msra.mxu0 0.0
        %1526 = vmatprep.subr.mxu0 0.0
        %1527 = vmatpush1.msra.mxu0 0.0
        %1528 = vmatprep.mubr.f32.mxu0 0.0
        %1529 = vmatmul.mubr.f32.gmra.mrb[0].mxu0 %v1462
        %v1530 = vpop.f32.mrb[0].mxu0
        %v1531 = vadd.f32 %v799, %v1530
        %v1532 = vpop.f32.mrb[0].mxu0
        %1533 = vdwg.mxu0
        %v1534 = vadd.f32 %v1458, %v1531
        %v1535 = vxor.u32 %v1534, 2147483648
        %v1536 = vmul.f32 %v1535, 1.442695
        %v1537 = vpow.pop %v1536
        %v1538 = vadd.f32 %v1537, 1.0
        %v1539 = vrcp.pop %v1538
        %v1540 = vmul.f32 1.0, %v1539
        %1542 = vrot.lane.b32.xlu0 %v1531, 64
        %v1543 = vpop.permute.xlu0 %1542
        %v1545 = vmul.f32 %v1540, %v1543
        %1547 = vrot.lane.b32.xlu0 %v1545, 64
        %v1548 = vpop.permute.xlu0 %1547
        %v1550 = vadd.f32 %v1458, %v1548
        %v1551 = vtanh.pop %v1550
        %v1552 = vsub.f32 %v1350, %v1551
        %1554 = vrot.lane.b32.xlu0 %v1552, 96
        %v1555 = vpop.permute.xlu0 %1554
        %v1557 = vmul.f32 %v1540, %v1555
        %1559 = vrot.lane.b32.xlu0 %v1557, 32
        %v1560 = vpop.permute.xlu0 %1559
        %v1562 = vadd.f32 %v1551, %v1560
        %v1563 = vld [vmem:[#allocation3] sm:$0xff]
        %1565 = vrot.lane.b32.xlu0 %v1456, 64
        %v1566 = vpop.permute.xlu0 %1565
        %v1567 = vsel %vm811, %v1566, 0
        %1569 = vmatprep.subr.mxu0 0.0
        %1570 = vmatpush1.msra.mxu0 %v790
        %1571 = vmatprep.subr.mxu0 0.0
        %1572 = vmatpush1.msra.mxu0 %v791
        %1573 = vmatprep.subr.mxu0 0.0
        %1574 = vmatpush1.msra.mxu0 %v792
        %1575 = vmatprep.subr.mxu0 0.0
        %1576 = vmatpush1.msra.mxu0 %v793
        %1577 = vmatprep.subr.mxu0 0.0
        %1578 = vmatpush1.msra.mxu0 0.0
        %1579 = vmatprep.subr.mxu0 0.0
        %1580 = vmatpush1.msra.mxu0 0.0
        %1581 = vmatprep.subr.mxu0 0.0
        %1582 = vmatpush1.msra.mxu0 0.0
        %1583 = vmatprep.subr.mxu0 0.0
        %1584 = vmatpush1.msra.mxu0 0.0
        %1585 = vmatprep.subr.mxu0 0.0
        %1586 = vmatpush1.msra.mxu0 0.0
        %1587 = vmatprep.subr.mxu0 0.0
        %1588 = vmatpush1.msra.mxu0 0.0
        %1589 = vmatprep.subr.mxu0 0.0
        %1590 = vmatpush1.msra.mxu0 0.0
        %1591 = vmatprep.subr.mxu0 0.0
        %1592 = vmatpush1.msra.mxu0 0.0
        %1593 = vmatprep.subr.mxu0 0.0
        %1594 = vmatpush1.msra.mxu0 0.0
        %1595 = vmatprep.subr.mxu0 0.0
        %1596 = vmatpush1.msra.mxu0 0.0
        %1597 = vmatprep.subr.mxu0 0.0
        %1598 = vmatpush1.msra.mxu0 0.0
        %1599 = vmatprep.subr.mxu0 0.0
        %1600 = vmatpush1.msra.mxu0 0.0
        %1601 = vmatprep.subr.mxu0 0.0
        %1602 = vmatpush1.msra.mxu0 0.0
        %1603 = vmatprep.subr.mxu0 0.0
        %1604 = vmatpush1.msra.mxu0 0.0
        %1605 = vmatprep.subr.mxu0 0.0
        %1606 = vmatpush1.msra.mxu0 0.0
        %1607 = vmatprep.subr.mxu0 0.0
        %1608 = vmatpush1.msra.mxu0 0.0
        %1609 = vmatprep.subr.mxu0 0.0
        %1610 = vmatpush1.msra.mxu0 0.0
        %1611 = vmatprep.subr.mxu0 0.0
        %1612 = vmatpush1.msra.mxu0 0.0
        %1613 = vmatprep.subr.mxu0 0.0
        %1614 = vmatpush1.msra.mxu0 0.0
        %1615 = vmatprep.subr.mxu0 0.0
        %1616 = vmatpush1.msra.mxu0 0.0
        %1617 = vmatprep.subr.mxu0 0.0
        %1618 = vmatpush1.msra.mxu0 0.0
        %1619 = vmatprep.subr.mxu0 0.0
        %1620 = vmatpush1.msra.mxu0 0.0
        %1621 = vmatprep.subr.mxu0 0.0
        %1622 = vmatpush1.msra.mxu0 0.0
        %1623 = vmatprep.subr.mxu0 0.0
        %1624 = vmatpush1.msra.mxu0 0.0
        %1625 = vmatprep.subr.mxu0 0.0
        %1626 = vmatpush1.msra.mxu0 0.0
        %1627 = vmatprep.subr.mxu0 0.0
        %1628 = vmatpush1.msra.mxu0 0.0
        %1629 = vmatprep.subr.mxu0 0.0
        %1630 = vmatpush1.msra.mxu0 0.0
        %1631 = vmatprep.subr.mxu0 0.0
        %1632 = vmatpush1.msra.mxu0 0.0
        %1633 = vmatprep.mubr.f32.mxu0 0.0
        %1634 = vmatmul.mubr.f32.gmra.mrb[0].mxu0 %v1567
        %v1635 = vpop.f32.mrb[0].mxu0
        %v1636 = vadd.f32 %v806, %v1635
        %v1637 = vpop.f32.mrb[0].mxu0
        %1638 = vdwg.mxu0
        %v1639 = vadd.f32 %v1563, %v1636
        %v1640 = vxor.u32 %v1639, 2147483648
        %v1641 = vmul.f32 %v1640, 1.442695
        %v1642 = vpow.pop %v1641
        %v1643 = vadd.f32 %v1642, 1.0
        %v1644 = vrcp.pop %v1643
        %v1645 = vmul.f32 1.0, %v1644
        %1647 = vrot.lane.b32.xlu0 %v1636, 64
        %v1648 = vpop.permute.xlu0 %1647
        %v1650 = vmul.f32 %v1645, %v1648
        %1652 = vrot.lane.b32.xlu0 %v1650, 64
        %v1653 = vpop.permute.xlu0 %1652
        %v1655 = vadd.f32 %v1563, %v1653
        %v1656 = vtanh.pop %v1655
        %v1657 = vsub.f32 %v1456, %v1656
        %1659 = vrot.lane.b32.xlu0 %v1657, 96
        %v1660 = vpop.permute.xlu0 %1659
        %v1662 = vmul.f32 %v1645, %v1660
        %1664 = vrot.lane.b32.xlu0 %v1662, 32
        %v1665 = vpop.permute.xlu0 %1664
        %v1667 = vadd.f32 %v1656, %v1665
        %1669 = vrot.lane.b32.xlu0 %v1562, 64
        %v1670 = vpop.permute.xlu0 %1669
        %1672 = vst.msk [vmem:[#allocation4] sm:$0xff] %vm811, %v1670
        %1674 = vrot.lane.b32.xlu0 %v1667, 64
        %v1675 = vpop.permute.xlu0 %1674
        %1677 = vst.msk [vmem:[#allocation5] sm:$0xff] %vm811, %v1675
        %p1678 = scmp.eq.s32.totalorder %s29, 1
        // Predicated region
        $region101: #{encoder_attention_forward.1} parent=71 // pred_check
          %p1679 = pneg %p1678
        $region102: #{encoder_attention_forward.1} parent=71 // pred_check_branch
          %1681 = sbr.rel (%p1679) target = $region104
        $region103: #{encoder_attention_forward.1} parent=71 // pred_region
          %v1682 = vld [vmem:[#allocation6] sm:$0xff]
          %1684 = vrot.lane.b32.xlu0 %v1682, 32
          %v1685 = vpop.permute.xlu0 %1684
          %v1687 = vsel %vm811, %v1670, %v1685
          %vm1688 = vcmask 523264
          %1689 = vst.msk [vmem:[%s13] sm:$0xff] %vm1688, %v1687
          %v1690 = vld [vmem:[%s10] sm:$0xff]
          %v1691 = vld [vmem:[%s10 + $0x8] sm:$0xff]
          %v1692 = vld [vmem:[%s10 + $0x10] sm:$0xff]
          %v1693 = vld [vmem:[%s10 + $0x18] sm:$0xff]
          %v1694 = vld [vmem:[#allocation12] sm:$0xff]
          %v1695 = vld [vmem:[#allocation12 + $0x8] sm:$0xff]
          %v1696 = vld [vmem:[#allocation12 + $0x10] sm:$0xff]
          %v1697 = vld [vmem:[#allocation12 + $0x18] sm:$0xff]
          %v1698 = vsel %vm811, %v1675, 0
          %1700 = vmatprep.subr.mxu0 0.0
          %1701 = vmatpush1.msra.mxu0 %v1694
          %1702 = vmatprep.subr.mxu0 0.0
          %1703 = vmatpush1.msra.mxu0 %v1695
          %1704 = vmatprep.subr.mxu0 0.0
          %1705 = vmatpush1.msra.mxu0 %v1696
          %1706 = vmatprep.subr.mxu0 0.0
          %1707 = vmatpush1.msra.mxu0 %v1697
          %1708 = vmatprep.subr.mxu0 0.0
          %1709 = vmatpush1.msra.mxu0 0.0
          %1710 = vmatprep.subr.mxu0 0.0
          %1711 = vmatpush1.msra.mxu0 0.0
          %1712 = vmatprep.subr.mxu0 0.0
          %1713 = vmatpush1.msra.mxu0 0.0
          %1714 = vmatprep.subr.mxu0 0.0
          %1715 = vmatpush1.msra.mxu0 0.0
          %1716 = vmatprep.subr.mxu0 0.0
          %1717 = vmatpush1.msra.mxu0 0.0
          %1718 = vmatprep.subr.mxu0 0.0
          %1719 = vmatpush1.msra.mxu0 0.0
          %1720 = vmatprep.subr.mxu0 0.0
          %1721 = vmatpush1.msra.mxu0 0.0
          %1722 = vmatprep.subr.mxu0 0.0
          %1723 = vmatpush1.msra.mxu0 0.0
          %1724 = vmatprep.subr.mxu0 0.0
          %1725 = vmatpush1.msra.mxu0 0.0
          %1726 = vmatprep.subr.mxu0 0.0
          %1727 = vmatpush1.msra.mxu0 0.0
          %1728 = vmatprep.subr.mxu0 0.0
          %1729 = vmatpush1.msra.mxu0 0.0
          %1730 = vmatprep.subr.mxu0 0.0
          %1731 = vmatpush1.msra.mxu0 0.0
          %1732 = vmatprep.subr.mxu0 0.0
          %1733 = vmatpush1.msra.mxu0 0.0
          %1734 = vmatprep.subr.mxu0 0.0
          %1735 = vmatpush1.msra.mxu0 0.0
          %1736 = vmatprep.subr.mxu0 0.0
          %1737 = vmatpush1.msra.mxu0 0.0
          %1738 = vmatprep.subr.mxu0 0.0
          %1739 = vmatpush1.msra.mxu0 0.0
          %1740 = vmatprep.subr.mxu0 0.0
          %1741 = vmatpush1.msra.mxu0 0.0
          %1742 = vmatprep.subr.mxu0 0.0
          %1743 = vmatpush1.msra.mxu0 0.0
          %1744 = vmatprep.subr.mxu0 0.0
          %1745 = vmatpush1.msra.mxu0 0.0
          %1746 = vmatprep.subr.mxu0 0.0
          %1747 = vmatpush1.msra.mxu0 0.0
          %1748 = vmatprep.subr.mxu0 0.0
          %1749 = vmatpush1.msra.mxu0 0.0
          %1750 = vmatprep.subr.mxu0 0.0
          %1751 = vmatpush1.msra.mxu0 0.0
          %1752 = vmatprep.subr.mxu0 0.0
          %1753 = vmatpush1.msra.mxu0 0.0
          %1754 = vmatprep.subr.mxu0 0.0
          %1755 = vmatpush1.msra.mxu0 0.0
          %1756 = vmatprep.subr.mxu0 0.0
          %1757 = vmatpush1.msra.mxu0 0.0
          %1758 = vmatprep.subr.mxu0 0.0
          %1759 = vmatpush1.msra.mxu0 0.0
          %1760 = vmatprep.subr.mxu0 0.0
          %1761 = vmatpush1.msra.mxu0 0.0
          %1762 = vmatprep.subr.mxu0 0.0
          %1763 = vmatpush1.msra.mxu0 0.0
          %1764 = vmatprep.mubr.f32.mxu0 0.0
          %1765 = vmatmul.mubr.f32.gmra.mrb[0].mxu0 %v1698
          %v1766 = vpop.f32.mrb[0].mxu0
          %v1767 = vadd.f32 0.0, %v1766
          %v1768 = vpop.f32.mrb[0].mxu0
          %1769 = vdwg.mxu0
          %v1770 = vsel %vm811, %v1670, 0
          %1772 = vmatprep.subr.mxu0 0.0
          %1773 = vmatpush1.msra.mxu0 %v1690
          %1774 = vmatprep.subr.mxu0 0.0
          %1775 = vmatpush1.msra.mxu0 %v1691
          %1776 = vmatprep.subr.mxu0 0.0
          %1777 = vmatpush1.msra.mxu0 %v1692
          %1778 = vmatprep.subr.mxu0 0.0
          %1779 = vmatpush1.msra.mxu0 %v1693
          %1780 = vmatprep.subr.mxu0 0.0
          %1781 = vmatpush1.msra.mxu0 0.0
          %1782 = vmatprep.subr.mxu0 0.0
          %1783 = vmatpush1.msra.mxu0 0.0
          %1784 = vmatprep.subr.mxu0 0.0
          %1785 = vmatpush1.msra.mxu0 0.0
          %1786 = vmatprep.subr.mxu0 0.0
          %1787 = vmatpush1.msra.mxu0 0.0
          %1788 = vmatprep.subr.mxu0 0.0
          %1789 = vmatpush1.msra.mxu0 0.0
          %1790 = vmatprep.subr.mxu0 0.0
          %1791 = vmatpush1.msra.mxu0 0.0
          %1792 = vmatprep.subr.mxu0 0.0
          %1793 = vmatpush1.msra.mxu0 0.0
          %1794 = vmatprep.subr.mxu0 0.0
          %1795 = vmatpush1.msra.mxu0 0.0
          %1796 = vmatprep.subr.mxu0 0.0
          %1797 = vmatpush1.msra.mxu0 0.0
          %1798 = vmatprep.subr.mxu0 0.0
          %1799 = vmatpush1.msra.mxu0 0.0
          %1800 = vmatprep.subr.mxu0 0.0
          %1801 = vmatpush1.msra.mxu0 0.0
          %1802 = vmatprep.subr.mxu0 0.0
          %1803 = vmatpush1.msra.mxu0 0.0
          %1804 = vmatprep.subr.mxu0 0.0
          %1805 = vmatpush1.msra.mxu0 0.0
          %1806 = vmatprep.subr.mxu0 0.0
          %1807 = vmatpush1.msra.mxu0 0.0
          %1808 = vmatprep.subr.mxu0 0.0
          %1809 = vmatpush1.msra.mxu0 0.0
          %1810 = vmatprep.subr.mxu0 0.0
          %1811 = vmatpush1.msra.mxu0 0.0
          %1812 = vmatprep.subr.mxu0 0.0
          %1813 = vmatpush1.msra.mxu0 0.0
          %1814 = vmatprep.subr.mxu0 0.0
          %1815 = vmatpush1.msra.mxu0 0.0
          %1816 = vmatprep.subr.mxu0 0.0
          %1817 = vmatpush1.msra.mxu0 0.0
          %1818 = vmatprep.subr.mxu0 0.0
          %1819 = vmatpush1.msra.mxu0 0.0
          %1820 = vmatprep.subr.mxu0 0.0
          %1821 = vmatpush1.msra.mxu0 0.0
          %1822 = vmatprep.subr.mxu0 0.0
          %1823 = vmatpush1.msra.mxu0 0.0
          %1824 = vmatprep.subr.mxu0 0.0
          %1825 = vmatpush1.msra.mxu0 0.0
          %1826 = vmatprep.subr.mxu0 0.0
          %1827 = vmatpush1.msra.mxu0 0.0
          %1828 = vmatprep.subr.mxu0 0.0
          %1829 = vmatpush1.msra.mxu0 0.0
          %1830 = vmatprep.subr.mxu0 0.0
          %1831 = vmatpush1.msra.mxu0 0.0
          %1832 = vmatprep.subr.mxu0 0.0
          %1833 = vmatpush1.msra.mxu0 0.0
          %1834 = vmatprep.subr.mxu0 0.0
          %1835 = vmatpush1.msra.mxu0 0.0
          %1836 = vmatprep.mubr.f32.mxu0 0.0
          %1837 = vmatmul.mubr.f32.gmra.mrb[0].mxu0 %v1770
          %v1838 = vpop.f32.mrb[0].mxu0
          %v1839 = vadd.f32 %v1767, %v1838
          %v1840 = vpop.f32.mrb[0].mxu0
          %1841 = vdwg.mxu0
          %v1842 = vld [vmem:[#allocation14] sm:$0x1]
          %v1844 = vlaneseq
          %v1845 = vshrl.u32 %v1844, 7
          %v1846 = vsub.s32 0, %v1845
          %v1847 = vrot.slane %v1842, %v1846
          %v1849 = vadd.f32 %v1839, %v1847
          %v1850 = vtanh.pop %v1849
          %1851 = vst.msk [vmem:[%s14] sm:$0xff] %vm811, %v1850
        $region104: #{encoder_attention_forward.1} parent=71 // pred_fallthru
          _
        // Predicated region
        $region105: #{encoder_attention_forward.1} parent=71 // pred_check
          %p1852 = pneg %p327
        $region106: #{encoder_attention_forward.1} parent=71 // pred_check_branch
          %1854 = sbr.rel (%p1852) target = $region108
        $region107: #{encoder_attention_forward.1} parent=71 // pred_region
          _
        $region108: #{encoder_attention_forward.1} parent=71 // pred_fallthru
          _
        // Predicated region
        $region109: #{encoder_attention_forward.1} parent=71 // pred_check
          %p1855 = pneg %p348
        $region110: #{encoder_attention_forward.1} parent=71 // pred_check_branch
          %1857 = sbr.rel (%p1855) target = $region112
        $region111: #{encoder_attention_forward.1} parent=71 // pred_region
          _
        $region112: #{encoder_attention_forward.1} parent=71 // pred_fallthru
          _
        // Predicated region
        $region113: #{encoder_attention_forward.1} parent=71 // pred_check
          %p1858 = pneg %p327
        $region114: #{encoder_attention_forward.1} parent=71 // pred_check_branch
          %1860 = sbr.rel (%p1858) target = $region116
        $region115: #{encoder_attention_forward.1} parent=71 // pred_region
          _
        $region116: #{encoder_attention_forward.1} parent=71 // pred_fallthru
          _
        // Predicated region
        $region117: #{encoder_attention_forward.1} parent=71 // pred_check
          %p1861 = pneg %p348
        $region118: #{encoder_attention_forward.1} parent=71 // pred_check_branch
          %1863 = sbr.rel (%p1861) target = $region120
        $region119: #{encoder_attention_forward.1} parent=71 // pred_region
          _
        $region120: #{encoder_attention_forward.1} parent=71 // pred_fallthru
          _
      $region72: #{encoder_attention_forward.1} parent=5 // pred_fallthru
        _
      %p1864 = scmp.le.s32.totalorder 2, %s24
      // Predicated region
      $region121: #{encoder_attention_forward.1} parent=5 // pred_check
        %p1865 = pneg %p1864
      $region122: #{encoder_attention_forward.1} parent=5 // pred_check_branch
        %1867 = sbr.rel (%p1865) target = $region124
      $region123: #{encoder_attention_forward.1} parent=5 // pred_region
        %s1868 = ssub.s32 %s24, 2
      $region124: #{encoder_attention_forward.1} parent=5 // pred_fallthru
        _
    $region6: #{encoder_attention_forward.1} parent=1 // loop_footer
      %s28 = sadd.s32 1, %s24
    $region7: #{encoder_attention_forward.1} parent=1 // loop_footer_branch
      %23 = sbr.rel target = $region3
    $region8: #{encoder_attention_forward.1} parent=1 // loop_exit
      _
    %1869 = vsyncpa [#allocation8], 1
    %s1870 = scalar_lea.sflag [#allocation8], 1
    %1871 = vsyncpa %s1870, 1
    %1872 = vsyncpa [#allocation10], 1
    %1873 = vsyncpa [#allocation13], 1

</llo_original>
